<compile_context>
chip_gen: v7x
topology: tpu7x:2x2x1
jax: 0.10.0
libtpu: 0.0.40
codegen_flags: <defaults>
</compile_context>

<pallas_src>
import functools

import jax
import jax.numpy as jnp
from jax.experimental import pallas as pl
from jax.experimental.pallas import tpu as pltpu

TM = 256  # lane tile (multiple of 128) for the M = N*Ho*Wo axis


# ----------------------------------------------------------------------------
# Pallas kernel: fused  out = PReLU(W @ A + bias)  with lane-dense output
# ----------------------------------------------------------------------------
def _gemm_bias_prelu_kernel(w_ref, a_ref, bias_ref, alpha_ref, o_ref):
    acc = jnp.dot(w_ref[...], a_ref[...], preferred_element_type=jnp.float32)
    acc = acc + bias_ref[...]            # (Cout, 1) broadcasts across lanes
    alpha = alpha_ref[0, 0]              # scalar PReLU slope from SMEM
    o_ref[...] = jnp.where(acc >= 0.0, acc, alpha * acc)


def gemm_bias_prelu(wmat, patches, bias, alpha):
    """wmat: (Co, K) bf16, patches: (K, M) f32, bias: (Co,) f32 -> (Co, M) f32."""
    co, kk = wmat.shape
    _, m = patches.shape
    a = patches.astype(jnp.bfloat16)     # bf16 MXU inputs, f32 accumulate
    return pl.pallas_call(
        _gemm_bias_prelu_kernel,
        out_shape=jax.ShapeDtypeStruct((co, m), jnp.float32),
        grid=(pl.cdiv(m, TM),),
        in_specs=[
            pl.BlockSpec((co, kk), lambda i: (0, 0)),            # resident weights
            pl.BlockSpec((kk, TM), lambda i: (0, i)),            # lane-dense patches
            pl.BlockSpec((co, 1), lambda i: (0, 0)),             # bias column
            pl.BlockSpec(memory_space=pltpu.MemorySpace.SMEM),   # prelu slope
        ],
        out_specs=pl.BlockSpec((co, TM), lambda i: (0, i)),
        compiler_params=pltpu.CompilerParams(
            dimension_semantics=("parallel",),
            vmem_limit_bytes=32 * 1024 * 1024,
        ),
    )(wmat, a, bias.reshape(co, 1).astype(jnp.float32),
      jnp.asarray(alpha, jnp.float32).reshape(1, 1))


# ----------------------------------------------------------------------------
# Conv2d + bias + PReLU (channels-first activations, im2col glue in JAX)
# ----------------------------------------------------------------------------
def conv2d_prelu(x, prm, k, stride, padding):
    """x: (Cin, N, H, W); prm['wmat']: (Cout, Cin*k*k) bf16."""
    cin, n, h, w = x.shape
    s, p = stride, padding
    ho = (h + 2 * p - k) // s + 1
    wo = (w + 2 * p - k) // s + 1
    xp = jnp.pad(x, ((0, 0), (0, 0), (p, p), (p, p)))
    rows = []
    for dy in range(k):
        for dx in range(k):
            rows.append(xp[:, :, dy:dy + s * (ho - 1) + 1:s,
                           dx:dx + s * (wo - 1) + 1:s])
    patches = jnp.stack(rows, axis=1).reshape(cin * k * k, n * ho * wo)
    out = gemm_bias_prelu(prm["wmat"], patches, prm["bias"], prm["alpha"])
    return out.reshape(-1, n, ho, wo)


# ----------------------------------------------------------------------------
# ConvTranspose2d + bias + PReLU via sub-pixel (phase) decomposition
# ----------------------------------------------------------------------------
def conv_transpose2d_prelu(x, prm, k, stride, padding):
    """x: (Cin, N, H, W); prm['wmat']: (s*s*Cout, Cin*(k/s)^2) bf16 (phase-packed)."""
    cin, n, h, w = x.shape
    s, p = stride, padding
    t = k // s                                      # per-phase kernel extent
    ho = (h - 1) * s - 2 * p + k
    wo = (w - 1) * s - 2 * p + k
    nsy, nsx = h + t - 1, w + t - 1                 # stride-1 start positions
    xp = jnp.pad(x, ((0, 0), (0, 0), (t - 1, t - 1), (t - 1, t - 1)))
    rows = []
    for ty in range(t):
        for tx in range(t):
            rows.append(xp[:, :, ty:ty + nsy, tx:tx + nsx])
    patches = jnp.stack(rows, axis=1).reshape(cin * t * t, n * nsy * nsx)
    out_all = gemm_bias_prelu(prm["wmat"], patches, prm["bias"], prm["alpha"])
    cout = out_all.shape[0] // (s * s)
    out_all = out_all.reshape(s * s, cout, n, nsy, nsx)
    # interleave the s*s phases into the full-resolution output
    result = jnp.zeros((cout, n, ho, wo), out_all.dtype)
    for ry in range(s):
        for rx in range(s):
            uy0 = max(0, -((ry - p) // s))          # ceil((p - ry) / s)
            ux0 = max(0, -((rx - p) // s))
            uy1 = (ho - 1 + p - ry) // s
            ux1 = (wo - 1 + p - rx) // s
            oy0 = uy0 * s + ry - p
            ox0 = ux0 * s + rx - p
            blk = out_all[ry * s + rx, :, :, uy0:uy1 + 1, ux0:ux1 + 1]
            result = result.at[:, :, oy0::s, ox0::s].set(blk)
    return result


# ----------------------------------------------------------------------------
# UpprojBlock forward (channels-first internally, NCHW at the boundary)
# ----------------------------------------------------------------------------
def upproj_forward(params, x_nchw, *, k, stride, padding):
    x = jnp.transpose(x_nchw, (1, 0, 2, 3))         # (C, N, H, W)
    h0 = conv_transpose2d_prelu(x, params["deconv_1"], k, stride, padding)
    l0 = conv2d_prelu(h0, params["conv_1"], k, stride, padding)
    h1 = conv_transpose2d_prelu(l0 - x, params["deconv_2"], k, stride, padding)
    out = h0 + h1
    return jnp.transpose(out, (1, 0, 2, 3))         # back to NCHW


# ----------------------------------------------------------------------------
# Parameter init (torch layouts) and one-time weight preparation
# ----------------------------------------------------------------------------
def _init_conv(key, cin, cout, k):
    k1, k2 = jax.random.split(key)
    return {"w": jax.random.normal(k1, (cout, cin, k, k), jnp.float32) * 0.05,
            "b": jax.random.normal(k2, (cout,), jnp.float32) * 0.05,
            "alpha": jnp.float32(0.2)}               # PReLU(num_parameters=1, init=0.2)


def _init_deconv(key, cin, cout, k):
    k1, k2 = jax.random.split(key)
    return {"w": jax.random.normal(k1, (cin, cout, k, k), jnp.float32) * 0.05,
            "b": jax.random.normal(k2, (cout,), jnp.float32) * 0.05,
            "alpha": jnp.float32(0.2)}


def init_upproj(key, cin, cout, k):
    k1, k2, k3 = jax.random.split(key, 3)
    return {"deconv_1": _init_deconv(k1, cin, cout, k),
            "conv_1": _init_conv(k2, cout, cout, k),
            "deconv_2": _init_deconv(k3, cout, cout, k)}


def prepare_conv_params(p):
    cout = p["w"].shape[0]
    return {"wmat": p["w"].reshape(cout, -1).astype(jnp.bfloat16),
            "bias": p["b"].astype(jnp.float32),
            "alpha": jnp.asarray(p["alpha"], jnp.float32)}


def prepare_deconv_params(p, stride):
    w = p["w"]                                       # (Cin, Cout, k, k) torch layout
    cin, cout, k, _ = w.shape
    s = stride
    assert k % s == 0, "phase decomposition requires stride | kernel_size"
    t = k // s
    w6 = w.reshape(cin, cout, t, s, t, s)            # ky = ty*s + ry, kx = tx*s + rx
    wflip = w6[:, :, ::-1, :, ::-1, :]               # flip taps within each phase
    wall = jnp.transpose(wflip, (3, 5, 1, 0, 2, 4)).reshape(s * s * cout, cin * t * t)
    return {"wmat": wall.astype(jnp.bfloat16),
            "bias": jnp.tile(p["b"], s * s).astype(jnp.float32),
            "alpha": jnp.asarray(p["alpha"], jnp.float32)}


def prepare_upproj(raw, stride):
    return {"deconv_1": prepare_deconv_params(raw["deconv_1"], stride),
            "conv_1": prepare_conv_params(raw["conv_1"]),
            "deconv_2": prepare_deconv_params(raw["deconv_2"], stride)}


# ----------------------------------------------------------------------------
# Pure-JAX f32 reference (for a loose numerical check of the bf16 kernel path)
# ----------------------------------------------------------------------------
def _ref_prelu(x, alpha):
    return jnp.where(x >= 0, x, alpha * x)


def _ref_conv(x, p, stride, padding):
    y = jax.lax.conv_general_dilated(
        x, p["w"], (stride, stride), [(padding, padding)] * 2,
        dimension_numbers=("NCHW", "OIHW", "NCHW"))
    return _ref_prelu(y + p["b"][None, :, None, None], p["alpha"])


def _ref_deconv(x, p, stride, padding):
    k = p["w"].shape[2]
    w_eq = jnp.transpose(p["w"][:, :, ::-1, ::-1], (1, 0, 2, 3))
    y = jax.lax.conv_general_dilated(
        x, w_eq, (1, 1), [(k - 1 - padding, k - 1 - padding)] * 2,
        lhs_dilation=(stride, stride),
        dimension_numbers=("NCHW", "OIHW", "NCHW"))
    return _ref_prelu(y + p["b"][None, :, None, None], p["alpha"])


def ref_upproj(raw, x, stride, padding):
    h0 = _ref_deconv(x, raw["deconv_1"], stride, padding)
    l0 = _ref_conv(h0, raw["conv_1"], stride, padding)
    h1 = _ref_deconv(l0 - x, raw["deconv_2"], stride, padding)
    return h0 + h1


# ----------------------------------------------------------------------------
if __name__ == "__main__":
    # 2x DBPN up-projection config: k=4, stride=2, padding=1.
    # UpprojBlock's `L_0_t - x` requires in_channel == out_channel.
    N, C, Hin, Win = 2, 8, 16, 16
    ksize, stride, padding = 4, 2, 1

    key = jax.random.PRNGKey(0)
    kp, kx = jax.random.split(key)
    raw = init_upproj(kp, C, C, ksize)
    params = prepare_upproj(raw, stride)
    x = jax.random.normal(kx, (N, C, Hin, Win), jnp.float32)

    fwd = jax.jit(functools.partial(upproj_forward, k=ksize, stride=stride,
                                    padding=padding))
    out = fwd(params, x)
    jax.block_until_ready(out)

    Hup = (Hin - 1) * stride - 2 * padding + ksize   # 32
    assert out.shape == (N, C, Hup, Hup), out.shape
    assert bool(jnp.all(jnp.isfinite(out)))

    ref = ref_upproj(raw, x, stride, padding)
    err = float(jnp.max(jnp.abs(out - ref)))
    assert err < 5e-2, f"max abs error vs f32 reference = {err}"
    print("KERNEL_OK")
</pallas_src>

<mosaic_0001>
module attributes {stable_mosaic.version = 11 : i64} {
  func.func @_gemm_bias_prelu_kernel(%arg0: i32, %arg1: memref<32x32xbf16, #tpu.memory_space<vmem>>, %arg2: memref<32x256xbf16, #tpu.memory_space<vmem>>, %arg3: memref<32x1xf32, #tpu.memory_space<vmem>>, %arg4: memref<1x1xf32, #tpu.memory_space<smem>>, %arg5: memref<32x256xf32, #tpu.memory_space<vmem>>) attributes {dimension_semantics = [#tpu.dimension_semantics<parallel>], iteration_bounds = array<i64: 3>, scalar_prefetch = 0 : i64, scratch_operands = 0 : i64, tpu.core_type = #tpu.core_type<tc>, window_params = [{pipeline_mode = #tpu.pipeline_mode<synchronous>, transform_indices = @transform_0, window_bounds = array<i64: 32, 32>}, {transform_indices = @transform_1, window_bounds = array<i64: 32, 256>}, {pipeline_mode = #tpu.pipeline_mode<synchronous>, transform_indices = @transform_2, window_bounds = array<i64: 32, 1>}, {transform_indices = @transform_3, window_bounds = array<i64: 1, 1>}, {transform_indices = @transform_4, window_bounds = array<i64: 32, 256>}]} {
    %c0 = arith.constant 0 : index
    %c0_0 = arith.constant 0 : index
    %0 = vector.load %arg1[%c0, %c0_0] : memref<32x32xbf16, #tpu.memory_space<vmem>>, vector<32x32xbf16>
    %c0_1 = arith.constant 0 : index
    %c0_2 = arith.constant 0 : index
    %1 = vector.load %arg2[%c0_1, %c0_2] : memref<32x256xbf16, #tpu.memory_space<vmem>>, vector<32x256xbf16>
    %cst = arith.constant dense<0.000000e+00> : vector<32x256xf32>
    %2 = tpu.matmul %0, %1, %cst {dimension_numbers = #tpu.dot_dimension_numbers<[1], [0], [0], [1], [0, 0, 1, 1], [], []>} : vector<32x32xbf16>, vector<32x256xbf16>, vector<32x256xf32> -> vector<32x256xf32>
    %c0_3 = arith.constant 0 : index
    %c0_4 = arith.constant 0 : index
    %3 = vector.load %arg3[%c0_3, %c0_4] : memref<32x1xf32, #tpu.memory_space<vmem>>, vector<32x1xf32>
    %4 = vector.broadcast %3 : vector<32x1xf32> to vector<32x256xf32>
    %5 = arith.addf %2, %4 : vector<32x256xf32>
    %c0_5 = arith.constant 0 : index
    %c0_6 = arith.constant 0 : index
    %6 = memref.load %arg4[%c0_5, %c0_6] : memref<1x1xf32, #tpu.memory_space<smem>>
    %cst_7 = arith.constant 0.000000e+00 : f32
    %7 = vector.broadcast %cst_7 : f32 to vector<32x256xf32>
    %8 = arith.cmpf oge, %5, %7 : vector<32x256xf32>
    %9 = vector.broadcast %6 : f32 to vector<32x256xf32>
    %10 = arith.mulf %9, %5 : vector<32x256xf32>
    %11 = arith.select %8, %5, %10 : vector<32x256xi1>, vector<32x256xf32>
    %c0_8 = arith.constant 0 : index
    %c0_9 = arith.constant 0 : index
    %12 = vector.load %arg5[%c0_8, %c0_9] : memref<32x256xf32, #tpu.memory_space<vmem>>, vector<32x256xf32>
    tpu.vector_store %arg5[%c0_8, %c0_9], %11 {strides = array<i32>} : memref<32x256xf32, #tpu.memory_space<vmem>>, vector<32x256xf32>,
    return
  }
  func.func @transform_0(%arg0: i32) -> (i32, i32) {
    %c0_i32 = arith.constant 0 : i32
    %c0_i32_0 = arith.constant 0 : i32
    %c0_i32_1 = arith.constant 0 : i32
    return %c0_i32, %c0_i32_0 : i32, i32
  }
  func.func @transform_1(%arg0: i32) -> (i32, i32) {
    %c0_i32 = arith.constant 0 : i32
    %c0_i32_0 = arith.constant 0 : i32
    return %c0_i32, %arg0 : i32, i32
  }
  func.func @transform_2(%arg0: i32) -> (i32, i32) {
    %c0_i32 = arith.constant 0 : i32
    %c0_i32_0 = arith.constant 0 : i32
    %c0_i32_1 = arith.constant 0 : i32
    return %c0_i32, %c0_i32_0 : i32, i32
  }
  func.func @transform_3(%arg0: i32) -> (i32, i32) {
    %c0_i32 = arith.constant 0 : i32
    %c0_i32_0 = arith.constant 0 : i32
    %c0_i32_1 = arith.constant 0 : i32
    return %c0_i32, %c0_i32_0 : i32, i32
  }
  func.func @transform_4(%arg0: i32) -> (i32, i32) {
    %c0_i32 = arith.constant 0 : i32
    %c0_i32_0 = arith.constant 0 : i32
    return %c0_i32, %arg0 : i32, i32
  }
}

module attributes {stable_mosaic.version = 11 : i64} {
  func.func @_gemm_bias_prelu_kernel(%arg0: i32, %arg1: memref<8x128xbf16, #tpu.memory_space<vmem>>, %arg2: memref<128x256xbf16, #tpu.memory_space<vmem>>, %arg3: memref<8x1xf32, #tpu.memory_space<vmem>>, %arg4: memref<1x1xf32, #tpu.memory_space<smem>>, %arg5: memref<8x256xf32, #tpu.memory_space<vmem>>) attributes {dimension_semantics = [#tpu.dimension_semantics<parallel>], iteration_bounds = array<i64: 2>, scalar_prefetch = 0 : i64, scratch_operands = 0 : i64, tpu.core_type = #tpu.core_type<tc>, window_params = [{pipeline_mode = #tpu.pipeline_mode<synchronous>, transform_indices = @transform_0, window_bounds = array<i64: 8, 128>}, {transform_indices = @transform_1, window_bounds = array<i64: 128, 256>}, {pipeline_mode = #tpu.pipeline_mode<synchronous>, transform_indices = @transform_2, window_bounds = array<i64: 8, 1>}, {transform_indices = @transform_3, window_bounds = array<i64: 1, 1>}, {transform_indices = @transform_4, window_bounds = array<i64: 8, 256>}]} {
    %c0 = arith.constant 0 : index
    %c0_0 = arith.constant 0 : index
    %0 = vector.load %arg1[%c0, %c0_0] : memref<8x128xbf16, #tpu.memory_space<vmem>>, vector<8x128xbf16>
    %c0_1 = arith.constant 0 : index
    %c0_2 = arith.constant 0 : index
    %1 = vector.load %arg2[%c0_1, %c0_2] : memref<128x256xbf16, #tpu.memory_space<vmem>>, vector<128x256xbf16>
    %cst = arith.constant dense<0.000000e+00> : vector<8x256xf32>
    %2 = tpu.matmul %0, %1, %cst {dimension_numbers = #tpu.dot_dimension_numbers<[1], [0], [0], [1], [0, 0, 1, 1], [], []>} : vector<8x128xbf16>, vector<128x256xbf16>, vector<8x256xf32> -> vector<8x256xf32>
    %c0_3 = arith.constant 0 : index
    %c0_4 = arith.constant 0 : index
    %3 = vector.load %arg3[%c0_3, %c0_4] : memref<8x1xf32, #tpu.memory_space<vmem>>, vector<8x1xf32>
    %4 = vector.broadcast %3 : vector<8x1xf32> to vector<8x256xf32>
    %5 = arith.addf %2, %4 : vector<8x256xf32>
    %c0_5 = arith.constant 0 : index
    %c0_6 = arith.constant 0 : index
    %6 = memref.load %arg4[%c0_5, %c0_6] : memref<1x1xf32, #tpu.memory_space<smem>>
    %cst_7 = arith.constant 0.000000e+00 : f32
    %7 = vector.broadcast %cst_7 : f32 to vector<8x256xf32>
    %8 = arith.cmpf oge, %5, %7 : vector<8x256xf32>
    %9 = vector.broadcast %6 : f32 to vector<8x256xf32>
    %10 = arith.mulf %9, %5 : vector<8x256xf32>
    %11 = arith.select %8, %5, %10 : vector<8x256xi1>, vector<8x256xf32>
    %c0_8 = arith.constant 0 : index
    %c0_9 = arith.constant 0 : index
    %12 = vector.load %arg5[%c0_8, %c0_9] : memref<8x256xf32, #tpu.memory_space<vmem>>, vector<8x256xf32>
    tpu.vector_store %arg5[%c0_8, %c0_9], %11 {strides = array<i32>} : memref<8x256xf32, #tpu.memory_space<vmem>>, vector<8x256xf32>,
    return
  }
  func.func @transform_0(%arg0: i32) -> (i32, i32) {
    %c0_i32 = arith.constant 0 : i32
    %c0_i32_0 = arith.constant 0 : i32
    %c0_i32_1 = arith.constant 0 : i32
    return %c0_i32, %c0_i32_0 : i32, i32
  }
  func.func @transform_1(%arg0: i32) -> (i32, i32) {
    %c0_i32 = arith.constant 0 : i32
    %c0_i32_0 = arith.constant 0 : i32
    return %c0_i32, %arg0 : i32, i32
  }
  func.func @transform_2(%arg0: i32) -> (i32, i32) {
    %c0_i32 = arith.constant 0 : i32
    %c0_i32_0 = arith.constant 0 : i32
    %c0_i32_1 = arith.constant 0 : i32
    return %c0_i32, %c0_i32_0 : i32, i32
  }
  func.func @transform_3(%arg0: i32) -> (i32, i32) {
    %c0_i32 = arith.constant 0 : i32
    %c0_i32_0 = arith.constant 0 : i32
    %c0_i32_1 = arith.constant 0 : i32
    return %c0_i32, %c0_i32_0 : i32, i32
  }
  func.func @transform_4(%arg0: i32) -> (i32, i32) {
    %c0_i32 = arith.constant 0 : i32
    %c0_i32_0 = arith.constant 0 : i32
    return %c0_i32, %arg0 : i32, i32
  }
}

</mosaic_0001>

<llo_original>
// kernel: upproj_forward.3
$region0: #{upproj_forward.3}
  #allocation0 [shape = 'u32[]', space=smem, size = 0x4, offset = 0x4, fixed_abs, tag = 'smem constant byte address 0x4 - core index']
  #allocation1 [shape = 'u32[144,128]{1,0:T(1,128)}', space=vmem, size = 0x12000, scoped, tag = 'internal scratch']
  #allocation2 [shape = 'f32[1,1]{1,0:T(1,128)S(6)}', space=smem, size = 0x200, scoped, tag = 'scoped memory for upproj_forward.3']
  %s0 = inlined_call_operand.vmem [shape: bf16[32,32], index: 0, kind: input, shape index: {}]
  %s1 = inlined_call_operand.vmem [shape: bf16[32,578], index: 1, kind: input, shape index: {}]
  %s2 = inlined_call_operand.vmem [shape: f32[32,1], index: 2, kind: input, shape index: {}]
  %s3 = inlined_call_operand.<no memory space> [shape: f32[1,1], index: 3, kind: input, shape index: {}]
  %s4 = inlined_call_operand.vmem [shape: f32[32,578], index: 4, kind: output, shape index: {}]
  %s5 = sld [smem:[#allocation0]]
  $region177: #{upproj_forward.3} parent=0
    _
  %s7 = ssub.s32 1, %s5
  %s8 = scalar_select 0, %s7, %s5
  %9 = sst [smem:[#allocation2]] %s3
  $region1: #{upproj_forward.3} parent=0
    #allocation3 [shape = 'u8[32768]{0}', space=vmem, size = 0x8000, scoped, tag = 'input window, operand 1']
    #allocation4 [shape = 'u8[65536]{0}', space=vmem, size = 0x10000, scoped, tag = 'output window, operand 0']
    loop: start=0, step=1, limit=5
    $region2: #{upproj_forward.3} parent=1 // loop_pre_header
      _
    $region3: #{upproj_forward.3} parent=1 // loop_header
      %s11 = sphi 0, %s15
      %p12 = scmp.ge.s32.totalorder %s11, 5
      %s19 = sphi 0, %s19
      %s21 = sphi 0, %s19
      %s22 = sphi 0, %s21
      %s36 = sphi 0, %s22
      %s42 = sphi 0, %s44
      %s45 = sphi 0, %s42
      %s46 = sphi 0, %s45
      %s62 = sphi 0, %s46
      %s66 = sphi 0, %s66
      %s68 = sphi 0, %s66
      %s69 = sphi 0, %s68
      %s83 = sphi 0, %s69
      %s87 = sphi 0, %s87
      %s89 = sphi 0, %s87
      %s90 = sphi 0, %s89
      %s104 = sphi 0, %s90
      %s110 = sphi 0, %s112
      %s113 = sphi 0, %s110
      %s114 = sphi 0, %s113
      %s130 = sphi 0, %s114
    $region4: #{upproj_forward.3} parent=1 // loop_header_branch
      %14 = sbr.rel (%p12) target = $region8
    $region5: #{upproj_forward.3} parent=1 // loop_body
      %s16 = ssub.s32 %s11, 1
      %s17 = ssub.s32 %s11, 2
      %s18 = sadd.s32 %s11, 1
      %s20 = sadd.s32 %s19, 1
      %p23 = scmp.eq.s32.totalorder %s11, 2
      %p24 = scmp.ne.s32.totalorder %s19, %s21
      %p25 = scmp.eq.s32.totalorder %s11, 0
      %p26 = por %p24, %p25
      %p27 = scmp.ne.s32.totalorder %s19, %s21
      %p28 = scmp.eq.s32.totalorder %s16, 2
      %p29 = por %p27, %p28
      %p30 = scmp.ne.s32.totalorder %s21, %s22
      %p31 = scmp.eq.s32.totalorder %s16, 0
      %p32 = por %p30, %p31
      %p33 = scmp.ne.s32.totalorder %s21, %s22
      %p34 = scmp.eq.s32.totalorder %s17, 2
      %p35 = por %p33, %p34
      %p37 = scmp.ne.s32.totalorder %s22, %s36
      %p38 = scmp.eq.s32.totalorder %s17, 0
      %p39 = por %p37, %p38
      %s40 = ssub.s32 %s11, %s18
      %p41 = scmp.eq.s32.totalorder %s40, 0
      %s43 = sadd.s32 %s42, 1
      %s44 = scalar_select %p41, %s42, %s43
      %p47 = pneg %p41
      %p48 = scmp.eq.s32.totalorder %s11, 2
      %p49 = por %p47, %p48
      %p50 = scmp.ne.s32.totalorder %s42, %s45
      %p51 = scmp.eq.s32.totalorder %s11, 0
      %p52 = por %p50, %p51
      %p53 = scmp.ne.s32.totalorder %s42, %s45
      %p54 = scmp.eq.s32.totalorder %s16, 2
      %p55 = por %p53, %p54
      %p56 = scmp.ne.s32.totalorder %s45, %s46
      %p57 = scmp.eq.s32.totalorder %s16, 0
      %p58 = por %p56, %p57
      %p59 = scmp.ne.s32.totalorder %s45, %s46
      %p60 = scmp.eq.s32.totalorder %s17, 2
      %p61 = por %p59, %p60
      %p63 = scmp.ne.s32.totalorder %s46, %s62
      %p64 = scmp.eq.s32.totalorder %s17, 0
      %p65 = por %p63, %p64
      %s67 = sadd.s32 %s66, 1
      %p70 = scmp.eq.s32.totalorder %s11, 2
      %p71 = scmp.ne.s32.totalorder %s66, %s68
      %p72 = scmp.eq.s32.totalorder %s11, 0
      %p73 = por %p71, %p72
      %p74 = scmp.ne.s32.totalorder %s66, %s68
      %p75 = scmp.eq.s32.totalorder %s16, 2
      %p76 = por %p74, %p75
      %p77 = scmp.ne.s32.totalorder %s68, %s69
      %p78 = scmp.eq.s32.totalorder %s16, 0
      %p79 = por %p77, %p78
      %p80 = scmp.ne.s32.totalorder %s68, %s69
      %p81 = scmp.eq.s32.totalorder %s17, 2
      %p82 = por %p80, %p81
      %p84 = scmp.ne.s32.totalorder %s69, %s83
      %p85 = scmp.eq.s32.totalorder %s17, 0
      %p86 = por %p84, %p85
      %s88 = sadd.s32 %s87, 1
      %p91 = scmp.eq.s32.totalorder %s11, 2
      %p92 = scmp.ne.s32.totalorder %s87, %s89
      %p93 = scmp.eq.s32.totalorder %s11, 0
      %p94 = por %p92, %p93
      %p95 = scmp.ne.s32.totalorder %s87, %s89
      %p96 = scmp.eq.s32.totalorder %s16, 2
      %p97 = por %p95, %p96
      %p98 = scmp.ne.s32.totalorder %s89, %s90
      %p99 = scmp.eq.s32.totalorder %s16, 0
      %p100 = por %p98, %p99
      %p101 = scmp.ne.s32.totalorder %s89, %s90
      %p102 = scmp.eq.s32.totalorder %s17, 2
      %p103 = por %p101, %p102
      %p105 = scmp.ne.s32.totalorder %s90, %s104
      %p106 = scmp.eq.s32.totalorder %s17, 0
      %p107 = por %p105, %p106
      %s108 = ssub.s32 %s11, %s18
      %p109 = scmp.eq.s32.totalorder %s108, 0
      %s111 = sadd.s32 %s110, 1
      %s112 = scalar_select %p109, %s110, %s111
      %p115 = pneg %p109
      %p116 = scmp.eq.s32.totalorder %s11, 2
      %p117 = por %p115, %p116
      %p118 = scmp.ne.s32.totalorder %s110, %s113
      %p119 = scmp.eq.s32.totalorder %s11, 0
      %p120 = por %p118, %p119
      %p121 = scmp.ne.s32.totalorder %s110, %s113
      %p122 = scmp.eq.s32.totalorder %s16, 2
      %p123 = por %p121, %p122
      %p124 = scmp.ne.s32.totalorder %s113, %s114
      %p125 = scmp.eq.s32.totalorder %s16, 0
      %p126 = por %p124, %p125
      %p127 = scmp.ne.s32.totalorder %s113, %s114
      %p128 = scmp.eq.s32.totalorder %s17, 2
      %p129 = por %p127, %p128
      %p131 = scmp.ne.s32.totalorder %s114, %s130
      %p132 = scmp.eq.s32.totalorder %s17, 0
      %p133 = por %p131, %p132
      %p134 = scmp.le.s32.totalorder 1, %s11
      %p135 = scmp.lt.s32.totalorder %s11, 4
      %p136 = pnand %p134, %p135
      %p137 = pneg %p136
      // Predicated region
      $region9: #{upproj_forward.3} parent=5 // pred_check
        _
      $region10: #{upproj_forward.3} parent=5 // pred_check_branch
        %139 = sbr.rel (%p136) target = $region12
      $region11: #{upproj_forward.3} parent=5 // pred_region
        %s140 = ssub.s32 %s11, 1
        // Predicated region
        $region13: #{upproj_forward.3} parent=11 // pred_check
          %p141 = pneg %p32
        $region14: #{upproj_forward.3} parent=11 // pred_check_branch
          %143 = sbr.rel (%p141) target = $region16
        $region15: #{upproj_forward.3} parent=11 // pred_region
          _
        $region16: #{upproj_forward.3} parent=11 // pred_fallthru
          _
        // Predicated region
        $region17: #{upproj_forward.3} parent=11 // pred_check
          %p144 = pneg %p79
        $region18: #{upproj_forward.3} parent=11 // pred_check_branch
          %146 = sbr.rel (%p144) target = $region20
        $region19: #{upproj_forward.3} parent=11 // pred_region
          _
        $region20: #{upproj_forward.3} parent=11 // pred_fallthru
          _
        // Predicated region
        $region21: #{upproj_forward.3} parent=11 // pred_check
          %p147 = pneg %p100
        $region22: #{upproj_forward.3} parent=11 // pred_check_branch
          %149 = sbr.rel (%p147) target = $region24
        $region23: #{upproj_forward.3} parent=11 // pred_region
          _
        $region24: #{upproj_forward.3} parent=11 // pred_fallthru
          _
      $region12: #{upproj_forward.3} parent=5 // pred_fallthru
        _
      %p150 = scmp.lt.s32.totalorder %s11, 3
      // Predicated region
      $region25: #{upproj_forward.3} parent=5 // pred_check
        %p151 = pneg %p150
      $region26: #{upproj_forward.3} parent=5 // pred_check_branch
        %153 = sbr.rel (%p151) target = $region28
      $region27: #{upproj_forward.3} parent=5 // pred_region
        // Predicated region
        $region29: #{upproj_forward.3} parent=27 // pred_check
          %p154 = pneg %p52
        $region30: #{upproj_forward.3} parent=27 // pred_check_branch
          %156 = sbr.rel (%p154) target = $region32
        $region31: #{upproj_forward.3} parent=27 // pred_region
          %s157 = sand.u32 %s42, 1
          %s158 = sand.u32 %s42, 1
          %s159 = smul.addr %s158, 32
          %s160 = scalar_lea.vmem [#allocation3], %s159
          %s161 = smul.u32 2, %s11
          %s162 = ssub.s32 5, %s161
          %p163 = scmp.lt.s32.totalorder %s162, 2
          %s164 = scalar_select %p163, %s162, 2
          %s165 = smul.u32 256, %s164
          %p166 = scmp.ne.s32.totalorder 0, %s165
          %s167 = smul.addr %s161, 4
          %s168 = scalar_lea.vmem %s1, %s167
          %s169 = smul.u32 %s164, 4
          // Predicated region
          $region33: #{upproj_forward.3} parent=31 // pred_check
            %p170 = pneg %p166
          $region34: #{upproj_forward.3} parent=31 // pred_check_branch
            %172 = sbr.rel (%p170) target = $region36
          $region35: #{upproj_forward.3} parent=31 // pred_region
            %p173 = scmp.lt.u32.totalorder %s169, 8
            %p174 = pneg %p173
            // Predicated region
            $region37: #{upproj_forward.3} parent=35 // pred_check
              _
            $region38: #{upproj_forward.3} parent=35 // pred_check_branch
              %176 = sbr.rel (%p173) target = $region40
            $region39: #{upproj_forward.3} parent=35 // pred_region
              %s197 = sand.u32 %s169, 7
              %p198 = scmp.eq.s32.totalorder %s197, 0
              // Predicated region
              $region52: #{upproj_forward.3} parent=39 // pred_check
                %p199 = pneg %p198
              $region53: #{upproj_forward.3} parent=39 // pred_check_branch
                %201 = sbr.rel (%p199) target = $region55
              $region54: #{upproj_forward.3} parent=39 // pred_region
                %s202 = sshrl.u32 %s169, 3
                %s203 = sshrl.u32 %s202, 4
                // While loop
                $region56: #{upproj_forward.3} parent=54 // loop_pre_header
                  _
                $region57: #{upproj_forward.3} parent=54 // loop_header
                  %s207 = sphi 0, %s209
                  %p208 = scmp.ge.s32.totalorder %s207, %s203
                  %s212 = sphi 0, %s345
                  %s213 = sphi %s168, %s348
                  %s214 = sphi %s160, %s349
                $region58: #{upproj_forward.3} parent=54 // loop_header_branch
                  %211 = sbr.rel (%p208) target = $region62
                $region59: #{upproj_forward.3} parent=54 // loop_body
                  %v215 = vld [vmem:[%s213] sm:$0xff]
                  %216 = vst [vmem:[%s214] sm:$0xff] %v215
                  %v217 = vld [vmem:[%s213 + $0x8] sm:$0xff]
                  %218 = vst [vmem:[%s214 + $0x8] sm:$0xff] %v217
                  %v219 = vld [vmem:[%s213 + $0x10] sm:$0xff]
                  %220 = vst [vmem:[%s214 + $0x10] sm:$0xff] %v219
                  %v221 = vld [vmem:[%s213 + $0x18] sm:$0xff]
                  %222 = vst [vmem:[%s214 + $0x18] sm:$0xff] %v221
                  %v223 = vld [vmem:[%s213 + $0x20] sm:$0xff]
                  %224 = vst [vmem:[%s214 + $0x20] sm:$0xff] %v223
                  %v225 = vld [vmem:[%s213 + $0x28] sm:$0xff]
                  %226 = vst [vmem:[%s214 + $0x28] sm:$0xff] %v225
                  %v227 = vld [vmem:[%s213 + $0x30] sm:$0xff]
                  %228 = vst [vmem:[%s214 + $0x30] sm:$0xff] %v227
                  %v229 = vld [vmem:[%s213 + $0x38] sm:$0xff]
                  %230 = vst [vmem:[%s214 + $0x38] sm:$0xff] %v229
                  %v231 = vld [vmem:[%s213 + $0x40] sm:$0xff]
                  %232 = vst [vmem:[%s214 + $0x40] sm:$0xff] %v231
                  %v233 = vld [vmem:[%s213 + $0x48] sm:$0xff]
                  %234 = vst [vmem:[%s214 + $0x48] sm:$0xff] %v233
                  %v235 = vld [vmem:[%s213 + $0x50] sm:$0xff]
                  %236 = vst [vmem:[%s214 + $0x50] sm:$0xff] %v235
                  %v237 = vld [vmem:[%s213 + $0x58] sm:$0xff]
                  %238 = vst [vmem:[%s214 + $0x58] sm:$0xff] %v237
                  %v239 = vld [vmem:[%s213 + $0x60] sm:$0xff]
                  %240 = vst [vmem:[%s214 + $0x60] sm:$0xff] %v239
                  %v241 = vld [vmem:[%s213 + $0x68] sm:$0xff]
                  %242 = vst [vmem:[%s214 + $0x68] sm:$0xff] %v241
                  %v243 = vld [vmem:[%s213 + $0x70] sm:$0xff]
                  %244 = vst [vmem:[%s214 + $0x70] sm:$0xff] %v243
                  %v245 = vld [vmem:[%s213 + $0x78] sm:$0xff]
                  %246 = vst [vmem:[%s214 + $0x78] sm:$0xff] %v245
                  %v247 = vld [vmem:[%s213 + $0x14] sm:$0xff]
                  %248 = vst [vmem:[%s214 + $0x8] sm:$0xff] %v247
                  %v249 = vld [vmem:[%s213 + $0x1c] sm:$0xff]
                  %250 = vst [vmem:[%s214 + $0x10] sm:$0xff] %v249
                  %v251 = vld [vmem:[%s213 + $0x24] sm:$0xff]
                  %252 = vst [vmem:[%s214 + $0x18] sm:$0xff] %v251
                  %v253 = vld [vmem:[%s213 + $0x2c] sm:$0xff]
                  %254 = vst [vmem:[%s214 + $0x20] sm:$0xff] %v253
                  %v255 = vld [vmem:[%s213 + $0x34] sm:$0xff]
                  %256 = vst [vmem:[%s214 + $0x28] sm:$0xff] %v255
                  %v257 = vld [vmem:[%s213 + $0x3c] sm:$0xff]
                  %258 = vst [vmem:[%s214 + $0x30] sm:$0xff] %v257
                  %v259 = vld [vmem:[%s213 + $0x44] sm:$0xff]
                  %260 = vst [vmem:[%s214 + $0x38] sm:$0xff] %v259
                  %v261 = vld [vmem:[%s213 + $0x4c] sm:$0xff]
                  %262 = vst [vmem:[%s214 + $0x40] sm:$0xff] %v261
                  %v263 = vld [vmem:[%s213 + $0x54] sm:$0xff]
                  %264 = vst [vmem:[%s214 + $0x48] sm:$0xff] %v263
                  %v265 = vld [vmem:[%s213 + $0x5c] sm:$0xff]
                  %266 = vst [vmem:[%s214 + $0x50] sm:$0xff] %v265
                  %v267 = vld [vmem:[%s213 + $0x64] sm:$0xff]
                  %268 = vst [vmem:[%s214 + $0x58] sm:$0xff] %v267
                  %v269 = vld [vmem:[%s213 + $0x6c] sm:$0xff]
                  %270 = vst [vmem:[%s214 + $0x60] sm:$0xff] %v269
                  %v271 = vld [vmem:[%s213 + $0x74] sm:$0xff]
                  %272 = vst [vmem:[%s214 + $0x68] sm:$0xff] %v271
                  %v273 = vld [vmem:[%s213 + $0x7c] sm:$0xff]
                  %274 = vst [vmem:[%s214 + $0x70] sm:$0xff] %v273
                  %v275 = vld [vmem:[%s213 + $0x84] sm:$0xff]
                  %276 = vst [vmem:[%s214 + $0x78] sm:$0xff] %v275
                  %v277 = vld [vmem:[%s213 + $0x8c] sm:$0xff]
                  %278 = vst [vmem:[%s214 + $0x80] sm:$0xff] %v277
                  %v279 = vld [vmem:[%s213 + $0x28] sm:$0xff]
                  %280 = vst [vmem:[%s214 + $0x10] sm:$0xff] %v279
                  %v281 = vld [vmem:[%s213 + $0x30] sm:$0xff]
                  %282 = vst [vmem:[%s214 + $0x18] sm:$0xff] %v281
                  %v283 = vld [vmem:[%s213 + $0x38] sm:$0xff]
                  %284 = vst [vmem:[%s214 + $0x20] sm:$0xff] %v283
                  %v285 = vld [vmem:[%s213 + $0x40] sm:$0xff]
                  %286 = vst [vmem:[%s214 + $0x28] sm:$0xff] %v285
                  %v287 = vld [vmem:[%s213 + $0x48] sm:$0xff]
                  %288 = vst [vmem:[%s214 + $0x30] sm:$0xff] %v287
                  %v289 = vld [vmem:[%s213 + $0x50] sm:$0xff]
                  %290 = vst [vmem:[%s214 + $0x38] sm:$0xff] %v289
                  %v291 = vld [vmem:[%s213 + $0x58] sm:$0xff]
                  %292 = vst [vmem:[%s214 + $0x40] sm:$0xff] %v291
                  %v293 = vld [vmem:[%s213 + $0x60] sm:$0xff]
                  %294 = vst [vmem:[%s214 + $0x48] sm:$0xff] %v293
                  %v295 = vld [vmem:[%s213 + $0x68] sm:$0xff]
                  %296 = vst [vmem:[%s214 + $0x50] sm:$0xff] %v295
                  %v297 = vld [vmem:[%s213 + $0x70] sm:$0xff]
                  %298 = vst [vmem:[%s214 + $0x58] sm:$0xff] %v297
                  %v299 = vld [vmem:[%s213 + $0x78] sm:$0xff]
                  %300 = vst [vmem:[%s214 + $0x60] sm:$0xff] %v299
                  %v301 = vld [vmem:[%s213 + $0x80] sm:$0xff]
                  %302 = vst [vmem:[%s214 + $0x68] sm:$0xff] %v301
                  %v303 = vld [vmem:[%s213 + $0x88] sm:$0xff]
                  %304 = vst [vmem:[%s214 + $0x70] sm:$0xff] %v303
                  %v305 = vld [vmem:[%s213 + $0x90] sm:$0xff]
                  %306 = vst [vmem:[%s214 + $0x78] sm:$0xff] %v305
                  %v307 = vld [vmem:[%s213 + $0x98] sm:$0xff]
                  %308 = vst [vmem:[%s214 + $0x80] sm:$0xff] %v307
                  %v309 = vld [vmem:[%s213 + $0xa0] sm:$0xff]
                  %310 = vst [vmem:[%s214 + $0x88] sm:$0xff] %v309
                  %v311 = vld [vmem:[%s213 + $0x3c] sm:$0xff]
                  %312 = vst [vmem:[%s214 + $0x18] sm:$0xff] %v311
                  %v313 = vld [vmem:[%s213 + $0x44] sm:$0xff]
                  %314 = vst [vmem:[%s214 + $0x20] sm:$0xff] %v313
                  %v315 = vld [vmem:[%s213 + $0x4c] sm:$0xff]
                  %316 = vst [vmem:[%s214 + $0x28] sm:$0xff] %v315
                  %v317 = vld [vmem:[%s213 + $0x54] sm:$0xff]
                  %318 = vst [vmem:[%s214 + $0x30] sm:$0xff] %v317
                  %v319 = vld [vmem:[%s213 + $0x5c] sm:$0xff]
                  %320 = vst [vmem:[%s214 + $0x38] sm:$0xff] %v319
                  %v321 = vld [vmem:[%s213 + $0x64] sm:$0xff]
                  %322 = vst [vmem:[%s214 + $0x40] sm:$0xff] %v321
                  %v323 = vld [vmem:[%s213 + $0x6c] sm:$0xff]
                  %324 = vst [vmem:[%s214 + $0x48] sm:$0xff] %v323
                  %v325 = vld [vmem:[%s213 + $0x74] sm:$0xff]
                  %326 = vst [vmem:[%s214 + $0x50] sm:$0xff] %v325
                  %v327 = vld [vmem:[%s213 + $0x7c] sm:$0xff]
                  %328 = vst [vmem:[%s214 + $0x58] sm:$0xff] %v327
                  %v329 = vld [vmem:[%s213 + $0x84] sm:$0xff]
                  %330 = vst [vmem:[%s214 + $0x60] sm:$0xff] %v329
                  %v331 = vld [vmem:[%s213 + $0x8c] sm:$0xff]
                  %332 = vst [vmem:[%s214 + $0x68] sm:$0xff] %v331
                  %v333 = vld [vmem:[%s213 + $0x94] sm:$0xff]
                  %334 = vst [vmem:[%s214 + $0x70] sm:$0xff] %v333
                  %v335 = vld [vmem:[%s213 + $0x9c] sm:$0xff]
                  %336 = vst [vmem:[%s214 + $0x78] sm:$0xff] %v335
                  %v337 = vld [vmem:[%s213 + $0xa4] sm:$0xff]
                  %338 = vst [vmem:[%s214 + $0x80] sm:$0xff] %v337
                  %v339 = vld [vmem:[%s213 + $0xac] sm:$0xff]
                  %340 = vst [vmem:[%s214 + $0x88] sm:$0xff] %v339
                  %v341 = vld [vmem:[%s213 + $0xb4] sm:$0xff]
                  %342 = vst [vmem:[%s214 + $0x90] sm:$0xff] %v341
                  %s343 = sadd.s32 1, %s212
                  %p344 = scmp.ge.s32.totalorder %s343, %s203
                  %s345 = scalar_select %p344, 0, %s343
                  %s346 = smul.u32 %s345, 128
                  %s347 = smul.u32 %s345, 128
                  %s348 = scalar_lea.vmem %s168, %s346
                  %s349 = scalar_lea.vmem %s160, %s347 [#allocation3]
                $region60: #{upproj_forward.3} parent=54 // loop_footer
                  %s209 = sadd.s32 %s207, 1
                $region61: #{upproj_forward.3} parent=54 // loop_footer_branch
                  %206 = sbr.rel target = $region57
                $region62: #{upproj_forward.3} parent=54 // loop_exit
                  _
                %s350 = sshrl.u32 %s202, 4
                %s351 = sand.u32 %s202, 15
                %s352 = smul.u32 %s350, 16
                %s353 = smul.u32 128, %s352
                %s354 = sshra.s32 %s353, 4
                %s355 = scalar_lea.vmem %s168, %s354
                %s356 = smul.u32 128, %s352
                %s357 = sshra.s32 %s356, 4
                %s358 = scalar_lea.vmem %s160, %s357 [#allocation3]
                // While loop
                $region63: #{upproj_forward.3} parent=54 // loop_pre_header
                  _
                $region64: #{upproj_forward.3} parent=54 // loop_header
                  %s362 = sphi 0, %s364
                  %p363 = scmp.ge.s32.totalorder %s362, %s351
                  %s367 = sphi 0, %s380
                  %s368 = sphi %s355, %s383
                  %s369 = sphi %s358, %s384
                $region65: #{upproj_forward.3} parent=54 // loop_header_branch
                  %366 = sbr.rel (%p363) target = $region69
                $region66: #{upproj_forward.3} parent=54 // loop_body
                  %v370 = vld [vmem:[%s368] sm:$0xff]
                  %371 = vst [vmem:[%s369] sm:$0xff] %v370
                  %v372 = vld [vmem:[%s368 + $0x14] sm:$0xff]
                  %373 = vst [vmem:[%s369 + $0x8] sm:$0xff] %v372
                  %v374 = vld [vmem:[%s368 + $0x28] sm:$0xff]
                  %375 = vst [vmem:[%s369 + $0x10] sm:$0xff] %v374
                  %v376 = vld [vmem:[%s368 + $0x3c] sm:$0xff]
                  %377 = vst [vmem:[%s369 + $0x18] sm:$0xff] %v376
                  %s378 = sadd.s32 1, %s367
                  %p379 = scmp.ge.s32.totalorder %s378, %s351
                  %s380 = scalar_select %p379, 0, %s378
                  %s381 = smul.u32 %s380, 8
                  %s382 = smul.u32 %s380, 8
                  %s383 = scalar_lea.vmem %s355, %s381
                  %s384 = scalar_lea.vmem %s358, %s382 [#allocation3]
                $region67: #{upproj_forward.3} parent=54 // loop_footer
                  %s364 = sadd.s32 %s362, 1
                $region68: #{upproj_forward.3} parent=54 // loop_footer_branch
                  %361 = sbr.rel target = $region64
                $region69: #{upproj_forward.3} parent=54 // loop_exit
                  _
              $region55: #{upproj_forward.3} parent=39 // pred_fallthru
                _
              %p385 = pneg %p198
              // Predicated region
              $region70: #{upproj_forward.3} parent=39 // pred_check
                _
              $region71: #{upproj_forward.3} parent=39 // pred_check_branch
                %387 = sbr.rel (%p198) target = $region73
              $region72: #{upproj_forward.3} parent=39 // pred_region
                %s388 = sand.u32 %s169, 7
                %s389 = ssub.s32 %s169, %s388
                %s390 = scalar_lea.vmem %s168, %s389
                %s391 = ssub.s32 %s169, %s388
                %s392 = scalar_lea.vmem %s160, %s391 [#allocation3]
                %s393 = sshrl.u32 %s169, 3
                %s394 = sshrl.u32 %s393, 4
                // While loop
                $region74: #{upproj_forward.3} parent=72 // loop_pre_header
                  _
                $region75: #{upproj_forward.3} parent=72 // loop_header
                  %s398 = sphi 0, %s400
                  %p399 = scmp.ge.s32.totalorder %s398, %s394
                  %s403 = sphi 0, %s536
                  %s404 = sphi %s168, %s539
                  %s405 = sphi %s160, %s540
                $region76: #{upproj_forward.3} parent=72 // loop_header_branch
                  %402 = sbr.rel (%p399) target = $region80
                $region77: #{upproj_forward.3} parent=72 // loop_body
                  %v406 = vld [vmem:[%s404] sm:$0xff]
                  %407 = vst [vmem:[%s405] sm:$0xff] %v406
                  %v408 = vld [vmem:[%s404 + $0x8] sm:$0xff]
                  %409 = vst [vmem:[%s405 + $0x8] sm:$0xff] %v408
                  %v410 = vld [vmem:[%s404 + $0x10] sm:$0xff]
                  %411 = vst [vmem:[%s405 + $0x10] sm:$0xff] %v410
                  %v412 = vld [vmem:[%s404 + $0x18] sm:$0xff]
                  %413 = vst [vmem:[%s405 + $0x18] sm:$0xff] %v412
                  %v414 = vld [vmem:[%s404 + $0x20] sm:$0xff]
                  %415 = vst [vmem:[%s405 + $0x20] sm:$0xff] %v414
                  %v416 = vld [vmem:[%s404 + $0x28] sm:$0xff]
                  %417 = vst [vmem:[%s405 + $0x28] sm:$0xff] %v416
                  %v418 = vld [vmem:[%s404 + $0x30] sm:$0xff]
                  %419 = vst [vmem:[%s405 + $0x30] sm:$0xff] %v418
                  %v420 = vld [vmem:[%s404 + $0x38] sm:$0xff]
                  %421 = vst [vmem:[%s405 + $0x38] sm:$0xff] %v420
                  %v422 = vld [vmem:[%s404 + $0x40] sm:$0xff]
                  %423 = vst [vmem:[%s405 + $0x40] sm:$0xff] %v422
                  %v424 = vld [vmem:[%s404 + $0x48] sm:$0xff]
                  %425 = vst [vmem:[%s405 + $0x48] sm:$0xff] %v424
                  %v426 = vld [vmem:[%s404 + $0x50] sm:$0xff]
                  %427 = vst [vmem:[%s405 + $0x50] sm:$0xff] %v426
                  %v428 = vld [vmem:[%s404 + $0x58] sm:$0xff]
                  %429 = vst [vmem:[%s405 + $0x58] sm:$0xff] %v428
                  %v430 = vld [vmem:[%s404 + $0x60] sm:$0xff]
                  %431 = vst [vmem:[%s405 + $0x60] sm:$0xff] %v430
                  %v432 = vld [vmem:[%s404 + $0x68] sm:$0xff]
                  %433 = vst [vmem:[%s405 + $0x68] sm:$0xff] %v432
                  %v434 = vld [vmem:[%s404 + $0x70] sm:$0xff]
                  %435 = vst [vmem:[%s405 + $0x70] sm:$0xff] %v434
                  %v436 = vld [vmem:[%s404 + $0x78] sm:$0xff]
                  %437 = vst [vmem:[%s405 + $0x78] sm:$0xff] %v436
                  %v438 = vld [vmem:[%s404 + $0x14] sm:$0xff]
                  %439 = vst [vmem:[%s405 + $0x8] sm:$0xff] %v438
                  %v440 = vld [vmem:[%s404 + $0x1c] sm:$0xff]
                  %441 = vst [vmem:[%s405 + $0x10] sm:$0xff] %v440
                  %v442 = vld [vmem:[%s404 + $0x24] sm:$0xff]
                  %443 = vst [vmem:[%s405 + $0x18] sm:$0xff] %v442
                  %v444 = vld [vmem:[%s404 + $0x2c] sm:$0xff]
                  %445 = vst [vmem:[%s405 + $0x20] sm:$0xff] %v444
                  %v446 = vld [vmem:[%s404 + $0x34] sm:$0xff]
                  %447 = vst [vmem:[%s405 + $0x28] sm:$0xff] %v446
                  %v448 = vld [vmem:[%s404 + $0x3c] sm:$0xff]
                  %449 = vst [vmem:[%s405 + $0x30] sm:$0xff] %v448
                  %v450 = vld [vmem:[%s404 + $0x44] sm:$0xff]
                  %451 = vst [vmem:[%s405 + $0x38] sm:$0xff] %v450
                  %v452 = vld [vmem:[%s404 + $0x4c] sm:$0xff]
                  %453 = vst [vmem:[%s405 + $0x40] sm:$0xff] %v452
                  %v454 = vld [vmem:[%s404 + $0x54] sm:$0xff]
                  %455 = vst [vmem:[%s405 + $0x48] sm:$0xff] %v454
                  %v456 = vld [vmem:[%s404 + $0x5c] sm:$0xff]
                  %457 = vst [vmem:[%s405 + $0x50] sm:$0xff] %v456
                  %v458 = vld [vmem:[%s404 + $0x64] sm:$0xff]
                  %459 = vst [vmem:[%s405 + $0x58] sm:$0xff] %v458
                  %v460 = vld [vmem:[%s404 + $0x6c] sm:$0xff]
                  %461 = vst [vmem:[%s405 + $0x60] sm:$0xff] %v460
                  %v462 = vld [vmem:[%s404 + $0x74] sm:$0xff]
                  %463 = vst [vmem:[%s405 + $0x68] sm:$0xff] %v462
                  %v464 = vld [vmem:[%s404 + $0x7c] sm:$0xff]
                  %465 = vst [vmem:[%s405 + $0x70] sm:$0xff] %v464
                  %v466 = vld [vmem:[%s404 + $0x84] sm:$0xff]
                  %467 = vst [vmem:[%s405 + $0x78] sm:$0xff] %v466
                  %v468 = vld [vmem:[%s404 + $0x8c] sm:$0xff]
                  %469 = vst [vmem:[%s405 + $0x80] sm:$0xff] %v468
                  %v470 = vld [vmem:[%s404 + $0x28] sm:$0xff]
                  %471 = vst [vmem:[%s405 + $0x10] sm:$0xff] %v470
                  %v472 = vld [vmem:[%s404 + $0x30] sm:$0xff]
                  %473 = vst [vmem:[%s405 + $0x18] sm:$0xff] %v472
                  %v474 = vld [vmem:[%s404 + $0x38] sm:$0xff]
                  %475 = vst [vmem:[%s405 + $0x20] sm:$0xff] %v474
                  %v476 = vld [vmem:[%s404 + $0x40] sm:$0xff]
                  %477 = vst [vmem:[%s405 + $0x28] sm:$0xff] %v476
                  %v478 = vld [vmem:[%s404 + $0x48] sm:$0xff]
                  %479 = vst [vmem:[%s405 + $0x30] sm:$0xff] %v478
                  %v480 = vld [vmem:[%s404 + $0x50] sm:$0xff]
                  %481 = vst [vmem:[%s405 + $0x38] sm:$0xff] %v480
                  %v482 = vld [vmem:[%s404 + $0x58] sm:$0xff]
                  %483 = vst [vmem:[%s405 + $0x40] sm:$0xff] %v482
                  %v484 = vld [vmem:[%s404 + $0x60] sm:$0xff]
                  %485 = vst [vmem:[%s405 + $0x48] sm:$0xff] %v484
                  %v486 = vld [vmem:[%s404 + $0x68] sm:$0xff]
                  %487 = vst [vmem:[%s405 + $0x50] sm:$0xff] %v486
                  %v488 = vld [vmem:[%s404 + $0x70] sm:$0xff]
                  %489 = vst [vmem:[%s405 + $0x58] sm:$0xff] %v488
                  %v490 = vld [vmem:[%s404 + $0x78] sm:$0xff]
                  %491 = vst [vmem:[%s405 + $0x60] sm:$0xff] %v490
                  %v492 = vld [vmem:[%s404 + $0x80] sm:$0xff]
                  %493 = vst [vmem:[%s405 + $0x68] sm:$0xff] %v492
                  %v494 = vld [vmem:[%s404 + $0x88] sm:$0xff]
                  %495 = vst [vmem:[%s405 + $0x70] sm:$0xff] %v494
                  %v496 = vld [vmem:[%s404 + $0x90] sm:$0xff]
                  %497 = vst [vmem:[%s405 + $0x78] sm:$0xff] %v496
                  %v498 = vld [vmem:[%s404 + $0x98] sm:$0xff]
                  %499 = vst [vmem:[%s405 + $0x80] sm:$0xff] %v498
                  %v500 = vld [vmem:[%s404 + $0xa0] sm:$0xff]
                  %501 = vst [vmem:[%s405 + $0x88] sm:$0xff] %v500
                  %v502 = vld [vmem:[%s404 + $0x3c] sm:$0xff]
                  %503 = vst [vmem:[%s405 + $0x18] sm:$0xff] %v502
                  %v504 = vld [vmem:[%s404 + $0x44] sm:$0xff]
                  %505 = vst [vmem:[%s405 + $0x20] sm:$0xff] %v504
                  %v506 = vld [vmem:[%s404 + $0x4c] sm:$0xff]
                  %507 = vst [vmem:[%s405 + $0x28] sm:$0xff] %v506
                  %v508 = vld [vmem:[%s404 + $0x54] sm:$0xff]
                  %509 = vst [vmem:[%s405 + $0x30] sm:$0xff] %v508
                  %v510 = vld [vmem:[%s404 + $0x5c] sm:$0xff]
                  %511 = vst [vmem:[%s405 + $0x38] sm:$0xff] %v510
                  %v512 = vld [vmem:[%s404 + $0x64] sm:$0xff]
                  %513 = vst [vmem:[%s405 + $0x40] sm:$0xff] %v512
                  %v514 = vld [vmem:[%s404 + $0x6c] sm:$0xff]
                  %515 = vst [vmem:[%s405 + $0x48] sm:$0xff] %v514
                  %v516 = vld [vmem:[%s404 + $0x74] sm:$0xff]
                  %517 = vst [vmem:[%s405 + $0x50] sm:$0xff] %v516
                  %v518 = vld [vmem:[%s404 + $0x7c] sm:$0xff]
                  %519 = vst [vmem:[%s405 + $0x58] sm:$0xff] %v518
                  %v520 = vld [vmem:[%s404 + $0x84] sm:$0xff]
                  %521 = vst [vmem:[%s405 + $0x60] sm:$0xff] %v520
                  %v522 = vld [vmem:[%s404 + $0x8c] sm:$0xff]
                  %523 = vst [vmem:[%s405 + $0x68] sm:$0xff] %v522
                  %v524 = vld [vmem:[%s404 + $0x94] sm:$0xff]
                  %525 = vst [vmem:[%s405 + $0x70] sm:$0xff] %v524
                  %v526 = vld [vmem:[%s404 + $0x9c] sm:$0xff]
                  %527 = vst [vmem:[%s405 + $0x78] sm:$0xff] %v526
                  %v528 = vld [vmem:[%s404 + $0xa4] sm:$0xff]
                  %529 = vst [vmem:[%s405 + $0x80] sm:$0xff] %v528
                  %v530 = vld [vmem:[%s404 + $0xac] sm:$0xff]
                  %531 = vst [vmem:[%s405 + $0x88] sm:$0xff] %v530
                  %v532 = vld [vmem:[%s404 + $0xb4] sm:$0xff]
                  %533 = vst [vmem:[%s405 + $0x90] sm:$0xff] %v532
                  %s534 = sadd.s32 1, %s403
                  %p535 = scmp.ge.s32.totalorder %s534, %s394
                  %s536 = scalar_select %p535, 0, %s534
                  %s537 = smul.u32 %s536, 128
                  %s538 = smul.u32 %s536, 128
                  %s539 = scalar_lea.vmem %s168, %s537
                  %s540 = scalar_lea.vmem %s160, %s538 [#allocation3]
                $region78: #{upproj_forward.3} parent=72 // loop_footer
                  %s400 = sadd.s32 %s398, 1
                $region79: #{upproj_forward.3} parent=72 // loop_footer_branch
                  %397 = sbr.rel target = $region75
                $region80: #{upproj_forward.3} parent=72 // loop_exit
                  _
                %s541 = sshrl.u32 %s393, 4
                %s542 = sand.u32 %s393, 15
                %s543 = smul.u32 %s541, 16
                %s544 = smul.u32 128, %s543
                %s545 = sshra.s32 %s544, 4
                %s546 = scalar_lea.vmem %s168, %s545
                %s547 = smul.u32 128, %s543
                %s548 = sshra.s32 %s547, 4
                %s549 = scalar_lea.vmem %s160, %s548 [#allocation3]
                // While loop
                $region81: #{upproj_forward.3} parent=72 // loop_pre_header
                  _
                $region82: #{upproj_forward.3} parent=72 // loop_header
                  %s553 = sphi 0, %s555
                  %p554 = scmp.ge.s32.totalorder %s553, %s542
                  %s558 = sphi 0, %s571
                  %s559 = sphi %s546, %s574
                  %s560 = sphi %s549, %s575
                $region83: #{upproj_forward.3} parent=72 // loop_header_branch
                  %557 = sbr.rel (%p554) target = $region87
                $region84: #{upproj_forward.3} parent=72 // loop_body
                  %v561 = vld [vmem:[%s559] sm:$0xff]
                  %562 = vst [vmem:[%s560] sm:$0xff] %v561
                  %v563 = vld [vmem:[%s559 + $0x14] sm:$0xff]
                  %564 = vst [vmem:[%s560 + $0x8] sm:$0xff] %v563
                  %v565 = vld [vmem:[%s559 + $0x28] sm:$0xff]
                  %566 = vst [vmem:[%s560 + $0x10] sm:$0xff] %v565
                  %v567 = vld [vmem:[%s559 + $0x3c] sm:$0xff]
                  %568 = vst [vmem:[%s560 + $0x18] sm:$0xff] %v567
                  %s569 = sadd.s32 1, %s558
                  %p570 = scmp.ge.s32.totalorder %s569, %s542
                  %s571 = scalar_select %p570, 0, %s569
                  %s572 = smul.u32 %s571, 8
                  %s573 = smul.u32 %s571, 8
                  %s574 = scalar_lea.vmem %s546, %s572
                  %s575 = scalar_lea.vmem %s549, %s573 [#allocation3]
                $region85: #{upproj_forward.3} parent=72 // loop_footer
                  %s555 = sadd.s32 %s553, 1
                $region86: #{upproj_forward.3} parent=72 // loop_footer_branch
                  %552 = sbr.rel target = $region82
                $region87: #{upproj_forward.3} parent=72 // loop_exit
                  _
                %s576 = sshllo.u32 0, %s388
                loop: start=0, step=1, limit=1
                $region88: #{upproj_forward.3} parent=72 // loop_pre_header
                  _
                $region89: #{upproj_forward.3} parent=72 // loop_header
                  %s578 = sphi 0, %s582
                  %p579 = scmp.ge.s32.totalorder %s578, 1
                  %s583 = sphi %s390, %s390
                  %s584 = sphi %s392, %s392
                $region90: #{upproj_forward.3} parent=72 // loop_header_branch
                  %581 = sbr.rel (%p579) target = $region94
                $region91: #{upproj_forward.3} parent=72 // loop_body
                  %v585 = vld [vmem:[%s583] sm:%s576]
                  %586 = vst [vmem:[%s584] sm:%s576] %v585
                  %v587 = vld [vmem:[%s583 + $0x14] sm:%s576]
                  %588 = vst [vmem:[%s584 + $0x8] sm:%s576] %v587
                  %v589 = vld [vmem:[%s583 + $0x28] sm:%s576]
                  %590 = vst [vmem:[%s584 + $0x10] sm:%s576] %v589
                  %v591 = vld [vmem:[%s583 + $0x3c] sm:%s576]
                  %592 = vst [vmem:[%s584 + $0x18] sm:%s576] %v591
                $region92: #{upproj_forward.3} parent=72 // loop_footer
                  %s582 = sadd.s32 1, %s578
                $region93: #{upproj_forward.3} parent=72 // loop_footer_branch
                  %577 = sbr.rel target = $region89
                $region94: #{upproj_forward.3} parent=72 // loop_exit
                  _
              $region73: #{upproj_forward.3} parent=39 // pred_fallthru
                _
            $region40: #{upproj_forward.3} parent=35 // pred_fallthru
              _
            // Predicated region
            $region41: #{upproj_forward.3} parent=35 // pred_check
              %p177 = pneg %p173
            $region42: #{upproj_forward.3} parent=35 // pred_check_branch
              %179 = sbr.rel (%p177) target = $region44
            $region43: #{upproj_forward.3} parent=35 // pred_region
              %s180 = sshllo.u32 0, %s169
              loop: start=0, step=1, limit=1
              $region45: #{upproj_forward.3} parent=43 // loop_pre_header
                _
              $region46: #{upproj_forward.3} parent=43 // loop_header
                %s182 = sphi 0, %s186
                %p183 = scmp.ge.s32.totalorder %s182, 1
                %s187 = sphi %s168, %s168
                %s188 = sphi %s160, %s160
              $region47: #{upproj_forward.3} parent=43 // loop_header_branch
                %185 = sbr.rel (%p183) target = $region51
              $region48: #{upproj_forward.3} parent=43 // loop_body
                %v189 = vld [vmem:[%s187] sm:%s180]
                %190 = vst [vmem:[%s188] sm:%s180] %v189
                %v191 = vld [vmem:[%s187 + $0x14] sm:%s180]
                %192 = vst [vmem:[%s188 + $0x8] sm:%s180] %v191
                %v193 = vld [vmem:[%s187 + $0x28] sm:%s180]
                %194 = vst [vmem:[%s188 + $0x10] sm:%s180] %v193
                %v195 = vld [vmem:[%s187 + $0x3c] sm:%s180]
                %196 = vst [vmem:[%s188 + $0x18] sm:%s180] %v195
              $region49: #{upproj_forward.3} parent=43 // loop_footer
                %s186 = sadd.s32 1, %s182
              $region50: #{upproj_forward.3} parent=43 // loop_footer_branch
                %181 = sbr.rel target = $region46
              $region51: #{upproj_forward.3} parent=43 // loop_exit
                _
            $region44: #{upproj_forward.3} parent=35 // pred_fallthru
              _
          $region36: #{upproj_forward.3} parent=31 // pred_fallthru
            _
          %593 = vnop
        $region32: #{upproj_forward.3} parent=27 // pred_fallthru
          _
      $region28: #{upproj_forward.3} parent=5 // pred_fallthru
        _
      %p594 = scmp.le.s32.totalorder 1, %s11
      %p595 = scmp.lt.s32.totalorder %s11, 4
      %p596 = pnand %p594, %p595
      %p597 = pneg %p596
      // Predicated region
      $region95: #{upproj_forward.3} parent=5 // pred_check
        _
      $region96: #{upproj_forward.3} parent=5 // pred_check_branch
        %599 = sbr.rel (%p596) target = $region98
      $region97: #{upproj_forward.3} parent=5 // pred_region
        %s600 = ssub.s32 %s11, 1
        %s601 = sand.u32 %s45, 1
        %s602 = sand.u32 %s45, 1
        %s603 = smul.addr %s602, 32
        %s604 = scalar_lea.vmem [#allocation3], %s603
        // Predicated region
        $region99: #{upproj_forward.3} parent=97 // pred_check
          %p605 = pneg %p58
        $region100: #{upproj_forward.3} parent=97 // pred_check_branch
          %607 = sbr.rel (%p605) target = $region102
        $region101: #{upproj_forward.3} parent=97 // pred_region
          _
        $region102: #{upproj_forward.3} parent=97 // pred_fallthru
          _
        %p608 = pneg %p32
        %p609 = pneg %p29
        %s610 = sand.u32 %s45, 1
        %s611 = sand.u32 %s45, 1
        %s612 = smul.addr %s611, 32
        %s613 = scalar_lea.vmem [#allocation3], %s612
        %p614 = pneg %p58
        %p615 = pneg %p55
        %p616 = pneg %p79
        %p617 = pneg %p76
        %p618 = pneg %p100
        %p619 = pneg %p97
        %p620 = pneg %p126
        %p621 = pneg %p123
        %s622 = sand.u32 %s113, 1
        %s623 = sand.u32 %s113, 1
        %s624 = smul.addr %s623, 64
        %s625 = scalar_lea.vmem [#allocation4], %s624
        %s626 = smul.u32 2, %s16
        %s627 = ssub.s32 5, %s626
        %p628 = scmp.lt.s32.totalorder %s627, 2
        %s629 = scalar_select %p628, %s627, 2
        %s630 = smul.u32 256, %s629
        %s631 = smul.u32 2, %s16
        %s632 = ssub.s32 5, %s631
        %p633 = scmp.lt.s32.totalorder %s632, 2
        %s634 = scalar_select %p633, %s632, 2
        %s635 = smul.u32 512, %s634
        %v637 = vld [vmem:[%s0] sm:$0xf]
        %v638 = vld [vmem:[%s0 + $0x4] sm:$0xf]
        %v639 = vld [vmem:[%s0 + $0x8] sm:$0xf]
        %v640 = vld [vmem:[%s0 + $0xc] sm:$0xf]
        %v641 = vld [vmem:[%s604] sm:$0xff]
        %v642 = vld [vmem:[%s604 + $0x8] sm:$0xff]
        %v643 = vld [vmem:[%s604 + $0x10] sm:$0xff]
        %v644 = vld [vmem:[%s604 + $0x18] sm:$0xff]
        %v645 = vld [vmem:[%s2] sm:$0xff]
        %v646 = vld [vmem:[%s2 + $0x8] sm:$0xff]
        %v647 = vld [vmem:[%s2 + $0x10] sm:$0xff]
        %v648 = vld [vmem:[%s2 + $0x18] sm:$0xff]
        %650 = vset.pattern.permute.xlu0 0
        %651 = vperm.xlu0 %650, %v645
        %v652 = vpop.permute.xlu0 %651
        %655 = vset.pattern.permute.xlu0 0
        %656 = vperm.xlu0 %655, %v646
        %v657 = vpop.permute.xlu0 %656
        %660 = vset.pattern.permute.xlu0 0
        %661 = vperm.xlu0 %660, %v647
        %v662 = vpop.permute.xlu0 %661
        %665 = vset.pattern.permute.xlu0 0
        %666 = vperm.xlu0 %665, %v648
        %v667 = vpop.permute.xlu0 %666
        %v673 = vunpack.c.l.b16 %v637
        %v674 = vunpack.c.l.b16 %v638
        %v675 = vunpack.c.l.b16 %v639
        %v676 = vunpack.c.l.b16 %v640
        %v677 = vpack.c.b16 %v674, %v673
        %v678 = vpack.c.b16 %v676, %v675
        %v683 = vunpack.c.l.b16 %v641
        %v684 = vunpack.c.h.b16 %v641
        %v685 = vunpack.c.l.b16 %v642
        %v686 = vunpack.c.h.b16 %v642
        %v687 = vunpack.c.l.b16 %v643
        %v688 = vunpack.c.h.b16 %v643
        %v689 = vunpack.c.l.b16 %v644
        %v690 = vunpack.c.h.b16 %v644
        %v691 = vpack.c.b16 %v685, %v683
        %v692 = vpack.c.b16 %v686, %v684
        %v693 = vpack.c.b16 %v689, %v687
        %v694 = vpack.c.b16 %v690, %v688
        %vm699 = vcmask 261120
        %v701 = vsel %vm699, %v677, 0
        %v704 = vsel %vm699, %v678, 0
        %706 = vmatprep.subr.bf16.mxu0 %v692
        %707 = vmatpush1.bf16.msra.mxu0 %v691
        %708 = vmatprep.subr.bf16.mxu0 %v694
        %709 = vmatpush1.bf16.msra.mxu0 %v693
        %710 = vmatprep.subr.bf16.mxu0 0
        %711 = vmatpush1.bf16.msra.mxu0 0
        %712 = vmatprep.subr.bf16.mxu0 0
        %713 = vmatpush1.bf16.msra.mxu0 0
        %714 = vmatprep.subr.bf16.mxu0 0
        %715 = vmatpush1.bf16.msra.mxu0 0
        %716 = vmatprep.subr.bf16.mxu0 0
        %717 = vmatpush1.bf16.msra.mxu0 0
        %718 = vmatprep.subr.bf16.mxu0 0
        %719 = vmatpush1.bf16.msra.mxu0 0
        %720 = vmatprep.subr.bf16.mxu0 0
        %721 = vmatpush1.bf16.msra.mxu0 0
        %722 = vmatprep.subr.bf16.mxu0 0
        %723 = vmatpush1.bf16.msra.mxu0 0
        %724 = vmatprep.subr.bf16.mxu0 0
        %725 = vmatpush1.bf16.msra.mxu0 0
        %726 = vmatprep.subr.bf16.mxu0 0
        %727 = vmatpush1.bf16.msra.mxu0 0
        %728 = vmatprep.subr.bf16.mxu0 0
        %729 = vmatpush1.bf16.msra.mxu0 0
        %730 = vmatprep.subr.bf16.mxu0 0
        %731 = vmatpush1.bf16.msra.mxu0 0
        %732 = vmatprep.subr.bf16.mxu0 0
        %733 = vmatpush1.bf16.msra.mxu0 0
        %734 = vmatprep.subr.bf16.mxu0 0
        %735 = vmatpush1.bf16.msra.mxu0 0
        %736 = vmatprep.subr.bf16.mxu0 0
        %737 = vmatpush1.bf16.msra.mxu0 0
        %738 = vmatprep.mubr.bf16.mxu0 0
        %739 = vmatmul.mubr.bf16.gmra.mrb[0].mxu0 %v701
        %v740 = vpop.f32.mrb[0].mxu0
        %v741 = vadd.f32 %v652, %v740
        %v742 = vpop.f32.mrb[0].mxu0
        %v743 = vadd.f32 %v652, %v742
        %v744 = vpop.f32.mrb[0].mxu0
        %v745 = vadd.f32 %v657, %v744
        %v746 = vpop.f32.mrb[0].mxu0
        %v747 = vadd.f32 %v657, %v746
        %748 = vmatprep.mubr.bf16.mxu0 0
        %749 = vmatmul.mubr.bf16.gmra.mrb[0].mxu0 %v704
        %v750 = vpop.f32.mrb[0].mxu0
        %v751 = vadd.f32 %v662, %v750
        %v752 = vpop.f32.mrb[0].mxu0
        %v753 = vadd.f32 %v662, %v752
        %v754 = vpop.f32.mrb[0].mxu0
        %v755 = vadd.f32 %v667, %v754
        %v756 = vpop.f32.mrb[0].mxu0
        %v757 = vadd.f32 %v667, %v756
        %758 = vdwg.mxu0
        %s759 = sld [smem:[#allocation2]]
        %vm760 = vcmp.ge.f32.partialorder %v741, 0.0
        %vm761 = vcmp.ge.f32.partialorder %v743, 0.0
        %vm762 = vcmp.ge.f32.partialorder %v745, 0.0
        %vm763 = vcmp.ge.f32.partialorder %v747, 0.0
        %vm764 = vcmp.ge.f32.partialorder %v751, 0.0
        %vm765 = vcmp.ge.f32.partialorder %v753, 0.0
        %vm766 = vcmp.ge.f32.partialorder %v755, 0.0
        %vm767 = vcmp.ge.f32.partialorder %v757, 0.0
        %v768 = vstv %s759
        %v769 = vmul.f32 %v768, %v741
        %v770 = vmul.f32 %v768, %v743
        %v771 = vmul.f32 %v768, %v745
        %v772 = vmul.f32 %v768, %v747
        %v773 = vmul.f32 %v768, %v751
        %v774 = vmul.f32 %v768, %v753
        %v775 = vmul.f32 %v768, %v755
        %v776 = vmul.f32 %v768, %v757
        %v777 = vsel %vm760, %v741, %v769
        %v778 = vsel %vm761, %v743, %v770
        %v779 = vsel %vm762, %v745, %v771
        %v780 = vsel %vm763, %v747, %v772
        %v781 = vsel %vm764, %v751, %v773
        %v782 = vsel %vm765, %v753, %v774
        %v783 = vsel %vm766, %v755, %v775
        %v784 = vsel %vm767, %v757, %v776
        %785 = vst [vmem:[%s625] sm:$0xff] %v777
        %786 = vst [vmem:[%s625 + $0x8] sm:$0xff] %v778
        %787 = vst [vmem:[%s625 + $0x10] sm:$0xff] %v779
        %788 = vst [vmem:[%s625 + $0x18] sm:$0xff] %v780
        %789 = vst [vmem:[%s625 + $0x20] sm:$0xff] %v781
        %790 = vst [vmem:[%s625 + $0x28] sm:$0xff] %v782
        %791 = vst [vmem:[%s625 + $0x30] sm:$0xff] %v783
        %792 = vst [vmem:[%s625 + $0x38] sm:$0xff] %v784
        %s793 = sand.u32 %s113, 1
        %s794 = sand.u32 %s113, 1
        %s795 = smul.addr %s794, 64
        %s796 = scalar_lea.vmem [#allocation4], %s795
        // Predicated region
        $region103: #{upproj_forward.3} parent=97 // pred_check
          %p797 = pneg %p123
        $region104: #{upproj_forward.3} parent=97 // pred_check_branch
          %799 = sbr.rel (%p797) target = $region106
        $region105: #{upproj_forward.3} parent=97 // pred_region
          %s800 = smul.u32 2, %s16
          %s801 = ssub.s32 5, %s800
          %p802 = scmp.lt.s32.totalorder %s801, 2
          %s803 = scalar_select %p802, %s801, 2
          %s804 = smul.u32 512, %s803
          %p805 = scmp.ne.s32.totalorder 0, %s804
          %s806 = smul.addr %s800, 8
          %s807 = scalar_lea.vmem %s4, %s806
          %s808 = smul.u32 %s803, 8
          // Predicated region
          $region107: #{upproj_forward.3} parent=105 // pred_check
            %p809 = pneg %p805
          $region108: #{upproj_forward.3} parent=105 // pred_check_branch
            %811 = sbr.rel (%p809) target = $region110
          $region109: #{upproj_forward.3} parent=105 // pred_region
            %p812 = scmp.lt.u32.totalorder %s808, 8
            %p813 = pneg %p812
            // Predicated region
            $region111: #{upproj_forward.3} parent=109 // pred_check
              _
            $region112: #{upproj_forward.3} parent=109 // pred_check_branch
              %815 = sbr.rel (%p812) target = $region114
            $region113: #{upproj_forward.3} parent=109 // pred_region
              %s836 = sand.u32 %s808, 7
              %p837 = scmp.eq.s32.totalorder %s836, 0
              // Predicated region
              $region126: #{upproj_forward.3} parent=113 // pred_check
                %p838 = pneg %p837
              $region127: #{upproj_forward.3} parent=113 // pred_check_branch
                %840 = sbr.rel (%p838) target = $region129
              $region128: #{upproj_forward.3} parent=113 // pred_region
                %s841 = sshrl.u32 %s808, 3
                %s842 = sshrl.u32 %s841, 4
                // While loop
                $region130: #{upproj_forward.3} parent=128 // loop_pre_header
                  _
                $region131: #{upproj_forward.3} parent=128 // loop_header
                  %s846 = sphi 0, %s848
                  %p847 = scmp.ge.s32.totalorder %s846, %s842
                  %s851 = sphi 0, %s984
                  %s852 = sphi %s796, %s987
                  %s853 = sphi %s807, %s988
                $region132: #{upproj_forward.3} parent=128 // loop_header_branch
                  %850 = sbr.rel (%p847) target = $region136
                $region133: #{upproj_forward.3} parent=128 // loop_body
                  %v854 = vld [vmem:[%s852] sm:$0xff]
                  %855 = vst [vmem:[%s853] sm:$0xff] %v854
                  %v856 = vld [vmem:[%s852 + $0x8] sm:$0xff]
                  %857 = vst [vmem:[%s853 + $0x8] sm:$0xff] %v856
                  %v858 = vld [vmem:[%s852 + $0x10] sm:$0xff]
                  %859 = vst [vmem:[%s853 + $0x10] sm:$0xff] %v858
                  %v860 = vld [vmem:[%s852 + $0x18] sm:$0xff]
                  %861 = vst [vmem:[%s853 + $0x18] sm:$0xff] %v860
                  %v862 = vld [vmem:[%s852 + $0x20] sm:$0xff]
                  %863 = vst [vmem:[%s853 + $0x20] sm:$0xff] %v862
                  %v864 = vld [vmem:[%s852 + $0x28] sm:$0xff]
                  %865 = vst [vmem:[%s853 + $0x28] sm:$0xff] %v864
                  %v866 = vld [vmem:[%s852 + $0x30] sm:$0xff]
                  %867 = vst [vmem:[%s853 + $0x30] sm:$0xff] %v866
                  %v868 = vld [vmem:[%s852 + $0x38] sm:$0xff]
                  %869 = vst [vmem:[%s853 + $0x38] sm:$0xff] %v868
                  %v870 = vld [vmem:[%s852 + $0x40] sm:$0xff]
                  %871 = vst [vmem:[%s853 + $0x40] sm:$0xff] %v870
                  %v872 = vld [vmem:[%s852 + $0x48] sm:$0xff]
                  %873 = vst [vmem:[%s853 + $0x48] sm:$0xff] %v872
                  %v874 = vld [vmem:[%s852 + $0x50] sm:$0xff]
                  %875 = vst [vmem:[%s853 + $0x50] sm:$0xff] %v874
                  %v876 = vld [vmem:[%s852 + $0x58] sm:$0xff]
                  %877 = vst [vmem:[%s853 + $0x58] sm:$0xff] %v876
                  %v878 = vld [vmem:[%s852 + $0x60] sm:$0xff]
                  %879 = vst [vmem:[%s853 + $0x60] sm:$0xff] %v878
                  %v880 = vld [vmem:[%s852 + $0x68] sm:$0xff]
                  %881 = vst [vmem:[%s853 + $0x68] sm:$0xff] %v880
                  %v882 = vld [vmem:[%s852 + $0x70] sm:$0xff]
                  %883 = vst [vmem:[%s853 + $0x70] sm:$0xff] %v882
                  %v884 = vld [vmem:[%s852 + $0x78] sm:$0xff]
                  %885 = vst [vmem:[%s853 + $0x78] sm:$0xff] %v884
                  %v886 = vld [vmem:[%s852 + $0x10] sm:$0xff]
                  %887 = vst [vmem:[%s853 + $0x28] sm:$0xff] %v886
                  %v888 = vld [vmem:[%s852 + $0x18] sm:$0xff]
                  %889 = vst [vmem:[%s853 + $0x30] sm:$0xff] %v888
                  %v890 = vld [vmem:[%s852 + $0x20] sm:$0xff]
                  %891 = vst [vmem:[%s853 + $0x38] sm:$0xff] %v890
                  %v892 = vld [vmem:[%s852 + $0x28] sm:$0xff]
                  %893 = vst [vmem:[%s853 + $0x40] sm:$0xff] %v892
                  %v894 = vld [vmem:[%s852 + $0x30] sm:$0xff]
                  %895 = vst [vmem:[%s853 + $0x48] sm:$0xff] %v894
                  %v896 = vld [vmem:[%s852 + $0x38] sm:$0xff]
                  %897 = vst [vmem:[%s853 + $0x50] sm:$0xff] %v896
                  %v898 = vld [vmem:[%s852 + $0x40] sm:$0xff]
                  %899 = vst [vmem:[%s853 + $0x58] sm:$0xff] %v898
                  %v900 = vld [vmem:[%s852 + $0x48] sm:$0xff]
                  %901 = vst [vmem:[%s853 + $0x60] sm:$0xff] %v900
                  %v902 = vld [vmem:[%s852 + $0x50] sm:$0xff]
                  %903 = vst [vmem:[%s853 + $0x68] sm:$0xff] %v902
                  %v904 = vld [vmem:[%s852 + $0x58] sm:$0xff]
                  %905 = vst [vmem:[%s853 + $0x70] sm:$0xff] %v904
                  %v906 = vld [vmem:[%s852 + $0x60] sm:$0xff]
                  %907 = vst [vmem:[%s853 + $0x78] sm:$0xff] %v906
                  %v908 = vld [vmem:[%s852 + $0x68] sm:$0xff]
                  %909 = vst [vmem:[%s853 + $0x80] sm:$0xff] %v908
                  %v910 = vld [vmem:[%s852 + $0x70] sm:$0xff]
                  %911 = vst [vmem:[%s853 + $0x88] sm:$0xff] %v910
                  %v912 = vld [vmem:[%s852 + $0x78] sm:$0xff]
                  %913 = vst [vmem:[%s853 + $0x90] sm:$0xff] %v912
                  %v914 = vld [vmem:[%s852 + $0x80] sm:$0xff]
                  %915 = vst [vmem:[%s853 + $0x98] sm:$0xff] %v914
                  %v916 = vld [vmem:[%s852 + $0x88] sm:$0xff]
                  %917 = vst [vmem:[%s853 + $0xa0] sm:$0xff] %v916
                  %v918 = vld [vmem:[%s852 + $0x20] sm:$0xff]
                  %919 = vst [vmem:[%s853 + $0x50] sm:$0xff] %v918
                  %v920 = vld [vmem:[%s852 + $0x28] sm:$0xff]
                  %921 = vst [vmem:[%s853 + $0x58] sm:$0xff] %v920
                  %v922 = vld [vmem:[%s852 + $0x30] sm:$0xff]
                  %923 = vst [vmem:[%s853 + $0x60] sm:$0xff] %v922
                  %v924 = vld [vmem:[%s852 + $0x38] sm:$0xff]
                  %925 = vst [vmem:[%s853 + $0x68] sm:$0xff] %v924
                  %v926 = vld [vmem:[%s852 + $0x40] sm:$0xff]
                  %927 = vst [vmem:[%s853 + $0x70] sm:$0xff] %v926
                  %v928 = vld [vmem:[%s852 + $0x48] sm:$0xff]
                  %929 = vst [vmem:[%s853 + $0x78] sm:$0xff] %v928
                  %v930 = vld [vmem:[%s852 + $0x50] sm:$0xff]
                  %931 = vst [vmem:[%s853 + $0x80] sm:$0xff] %v930
                  %v932 = vld [vmem:[%s852 + $0x58] sm:$0xff]
                  %933 = vst [vmem:[%s853 + $0x88] sm:$0xff] %v932
                  %v934 = vld [vmem:[%s852 + $0x60] sm:$0xff]
                  %935 = vst [vmem:[%s853 + $0x90] sm:$0xff] %v934
                  %v936 = vld [vmem:[%s852 + $0x68] sm:$0xff]
                  %937 = vst [vmem:[%s853 + $0x98] sm:$0xff] %v936
                  %v938 = vld [vmem:[%s852 + $0x70] sm:$0xff]
                  %939 = vst [vmem:[%s853 + $0xa0] sm:$0xff] %v938
                  %v940 = vld [vmem:[%s852 + $0x78] sm:$0xff]
                  %941 = vst [vmem:[%s853 + $0xa8] sm:$0xff] %v940
                  %v942 = vld [vmem:[%s852 + $0x80] sm:$0xff]
                  %943 = vst [vmem:[%s853 + $0xb0] sm:$0xff] %v942
                  %v944 = vld [vmem:[%s852 + $0x88] sm:$0xff]
                  %945 = vst [vmem:[%s853 + $0xb8] sm:$0xff] %v944
                  %v946 = vld [vmem:[%s852 + $0x90] sm:$0xff]
                  %947 = vst [vmem:[%s853 + $0xc0] sm:$0xff] %v946
                  %v948 = vld [vmem:[%s852 + $0x98] sm:$0xff]
                  %949 = vst [vmem:[%s853 + $0xc8] sm:$0xff] %v948
                  %v950 = vld [vmem:[%s852 + $0x30] sm:$0xff]
                  %951 = vst [vmem:[%s853 + $0x78] sm:$0xff] %v950
                  %v952 = vld [vmem:[%s852 + $0x38] sm:$0xff]
                  %953 = vst [vmem:[%s853 + $0x80] sm:$0xff] %v952
                  %v954 = vld [vmem:[%s852 + $0x40] sm:$0xff]
                  %955 = vst [vmem:[%s853 + $0x88] sm:$0xff] %v954
                  %v956 = vld [vmem:[%s852 + $0x48] sm:$0xff]
                  %957 = vst [vmem:[%s853 + $0x90] sm:$0xff] %v956
                  %v958 = vld [vmem:[%s852 + $0x50] sm:$0xff]
                  %959 = vst [vmem:[%s853 + $0x98] sm:$0xff] %v958
                  %v960 = vld [vmem:[%s852 + $0x58] sm:$0xff]
                  %961 = vst [vmem:[%s853 + $0xa0] sm:$0xff] %v960
                  %v962 = vld [vmem:[%s852 + $0x60] sm:$0xff]
                  %963 = vst [vmem:[%s853 + $0xa8] sm:$0xff] %v962
                  %v964 = vld [vmem:[%s852 + $0x68] sm:$0xff]
                  %965 = vst [vmem:[%s853 + $0xb0] sm:$0xff] %v964
                  %v966 = vld [vmem:[%s852 + $0x70] sm:$0xff]
                  %967 = vst [vmem:[%s853 + $0xb8] sm:$0xff] %v966
                  %v968 = vld [vmem:[%s852 + $0x78] sm:$0xff]
                  %969 = vst [vmem:[%s853 + $0xc0] sm:$0xff] %v968
                  %v970 = vld [vmem:[%s852 + $0x80] sm:$0xff]
                  %971 = vst [vmem:[%s853 + $0xc8] sm:$0xff] %v970
                  %v972 = vld [vmem:[%s852 + $0x88] sm:$0xff]
                  %973 = vst [vmem:[%s853 + $0xd0] sm:$0xff] %v972
                  %v974 = vld [vmem:[%s852 + $0x90] sm:$0xff]
                  %975 = vst [vmem:[%s853 + $0xd8] sm:$0xff] %v974
                  %v976 = vld [vmem:[%s852 + $0x98] sm:$0xff]
                  %977 = vst [vmem:[%s853 + $0xe0] sm:$0xff] %v976
                  %v978 = vld [vmem:[%s852 + $0xa0] sm:$0xff]
                  %979 = vst [vmem:[%s853 + $0xe8] sm:$0xff] %v978
                  %v980 = vld [vmem:[%s852 + $0xa8] sm:$0xff]
                  %981 = vst [vmem:[%s853 + $0xf0] sm:$0xff] %v980
                  %s982 = sadd.s32 1, %s851
                  %p983 = scmp.ge.s32.totalorder %s982, %s842
                  %s984 = scalar_select %p983, 0, %s982
                  %s985 = smul.u32 %s984, 128
                  %s986 = smul.u32 %s984, 128
                  %s987 = scalar_lea.vmem %s796, %s985 [#allocation4]
                  %s988 = scalar_lea.vmem %s807, %s986
                $region134: #{upproj_forward.3} parent=128 // loop_footer
                  %s848 = sadd.s32 %s846, 1
                $region135: #{upproj_forward.3} parent=128 // loop_footer_branch
                  %845 = sbr.rel target = $region131
                $region136: #{upproj_forward.3} parent=128 // loop_exit
                  _
                %s989 = sshrl.u32 %s841, 4
                %s990 = sand.u32 %s841, 15
                %s991 = smul.u32 %s989, 16
                %s992 = smul.u32 128, %s991
                %s993 = sshra.s32 %s992, 4
                %s994 = scalar_lea.vmem %s796, %s993 [#allocation4]
                %s995 = smul.u32 128, %s991
                %s996 = sshra.s32 %s995, 4
                %s997 = scalar_lea.vmem %s807, %s996
                // While loop
                $region137: #{upproj_forward.3} parent=128 // loop_pre_header
                  _
                $region138: #{upproj_forward.3} parent=128 // loop_header
                  %s1001 = sphi 0, %s1003
                  %p1002 = scmp.ge.s32.totalorder %s1001, %s990
                  %s1006 = sphi 0, %s1019
                  %s1007 = sphi %s994, %s1022
                  %s1008 = sphi %s997, %s1023
                $region139: #{upproj_forward.3} parent=128 // loop_header_branch
                  %1005 = sbr.rel (%p1002) target = $region143
                $region140: #{upproj_forward.3} parent=128 // loop_body
                  %v1009 = vld [vmem:[%s1007] sm:$0xff]
                  %1010 = vst [vmem:[%s1008] sm:$0xff] %v1009
                  %v1011 = vld [vmem:[%s1007 + $0x10] sm:$0xff]
                  %1012 = vst [vmem:[%s1008 + $0x28] sm:$0xff] %v1011
                  %v1013 = vld [vmem:[%s1007 + $0x20] sm:$0xff]
                  %1014 = vst [vmem:[%s1008 + $0x50] sm:$0xff] %v1013
                  %v1015 = vld [vmem:[%s1007 + $0x30] sm:$0xff]
                  %1016 = vst [vmem:[%s1008 + $0x78] sm:$0xff] %v1015
                  %s1017 = sadd.s32 1, %s1006
                  %p1018 = scmp.ge.s32.totalorder %s1017, %s990
                  %s1019 = scalar_select %p1018, 0, %s1017
                  %s1020 = smul.u32 %s1019, 8
                  %s1021 = smul.u32 %s1019, 8
                  %s1022 = scalar_lea.vmem %s994, %s1020 [#allocation4]
                  %s1023 = scalar_lea.vmem %s997, %s1021
                $region141: #{upproj_forward.3} parent=128 // loop_footer
                  %s1003 = sadd.s32 %s1001, 1
                $region142: #{upproj_forward.3} parent=128 // loop_footer_branch
                  %1000 = sbr.rel target = $region138
                $region143: #{upproj_forward.3} parent=128 // loop_exit
                  _
              $region129: #{upproj_forward.3} parent=113 // pred_fallthru
                _
              %p1024 = pneg %p837
              // Predicated region
              $region144: #{upproj_forward.3} parent=113 // pred_check
                _
              $region145: #{upproj_forward.3} parent=113 // pred_check_branch
                %1026 = sbr.rel (%p837) target = $region147
              $region146: #{upproj_forward.3} parent=113 // pred_region
                %s1027 = sand.u32 %s808, 7
                %s1028 = ssub.s32 %s808, %s1027
                %s1029 = scalar_lea.vmem %s796, %s1028 [#allocation4]
                %s1030 = ssub.s32 %s808, %s1027
                %s1031 = scalar_lea.vmem %s807, %s1030
                %s1032 = sshrl.u32 %s808, 3
                %s1033 = sshrl.u32 %s1032, 4
                // While loop
                $region148: #{upproj_forward.3} parent=146 // loop_pre_header
                  _
                $region149: #{upproj_forward.3} parent=146 // loop_header
                  %s1037 = sphi 0, %s1039
                  %p1038 = scmp.ge.s32.totalorder %s1037, %s1033
                  %s1042 = sphi 0, %s1175
                  %s1043 = sphi %s796, %s1178
                  %s1044 = sphi %s807, %s1179
                $region150: #{upproj_forward.3} parent=146 // loop_header_branch
                  %1041 = sbr.rel (%p1038) target = $region154
                $region151: #{upproj_forward.3} parent=146 // loop_body
                  %v1045 = vld [vmem:[%s1043] sm:$0xff]
                  %1046 = vst [vmem:[%s1044] sm:$0xff] %v1045
                  %v1047 = vld [vmem:[%s1043 + $0x8] sm:$0xff]
                  %1048 = vst [vmem:[%s1044 + $0x8] sm:$0xff] %v1047
                  %v1049 = vld [vmem:[%s1043 + $0x10] sm:$0xff]
                  %1050 = vst [vmem:[%s1044 + $0x10] sm:$0xff] %v1049
                  %v1051 = vld [vmem:[%s1043 + $0x18] sm:$0xff]
                  %1052 = vst [vmem:[%s1044 + $0x18] sm:$0xff] %v1051
                  %v1053 = vld [vmem:[%s1043 + $0x20] sm:$0xff]
                  %1054 = vst [vmem:[%s1044 + $0x20] sm:$0xff] %v1053
                  %v1055 = vld [vmem:[%s1043 + $0x28] sm:$0xff]
                  %1056 = vst [vmem:[%s1044 + $0x28] sm:$0xff] %v1055
                  %v1057 = vld [vmem:[%s1043 + $0x30] sm:$0xff]
                  %1058 = vst [vmem:[%s1044 + $0x30] sm:$0xff] %v1057
                  %v1059 = vld [vmem:[%s1043 + $0x38] sm:$0xff]
                  %1060 = vst [vmem:[%s1044 + $0x38] sm:$0xff] %v1059
                  %v1061 = vld [vmem:[%s1043 + $0x40] sm:$0xff]
                  %1062 = vst [vmem:[%s1044 + $0x40] sm:$0xff] %v1061
                  %v1063 = vld [vmem:[%s1043 + $0x48] sm:$0xff]
                  %1064 = vst [vmem:[%s1044 + $0x48] sm:$0xff] %v1063
                  %v1065 = vld [vmem:[%s1043 + $0x50] sm:$0xff]
                  %1066 = vst [vmem:[%s1044 + $0x50] sm:$0xff] %v1065
                  %v1067 = vld [vmem:[%s1043 + $0x58] sm:$0xff]
                  %1068 = vst [vmem:[%s1044 + $0x58] sm:$0xff] %v1067
                  %v1069 = vld [vmem:[%s1043 + $0x60] sm:$0xff]
                  %1070 = vst [vmem:[%s1044 + $0x60] sm:$0xff] %v1069
                  %v1071 = vld [vmem:[%s1043 + $0x68] sm:$0xff]
                  %1072 = vst [vmem:[%s1044 + $0x68] sm:$0xff] %v1071
                  %v1073 = vld [vmem:[%s1043 + $0x70] sm:$0xff]
                  %1074 = vst [vmem:[%s1044 + $0x70] sm:$0xff] %v1073
                  %v1075 = vld [vmem:[%s1043 + $0x78] sm:$0xff]
                  %1076 = vst [vmem:[%s1044 + $0x78] sm:$0xff] %v1075
                  %v1077 = vld [vmem:[%s1043 + $0x10] sm:$0xff]
                  %1078 = vst [vmem:[%s1044 + $0x28] sm:$0xff] %v1077
                  %v1079 = vld [vmem:[%s1043 + $0x18] sm:$0xff]
                  %1080 = vst [vmem:[%s1044 + $0x30] sm:$0xff] %v1079
                  %v1081 = vld [vmem:[%s1043 + $0x20] sm:$0xff]
                  %1082 = vst [vmem:[%s1044 + $0x38] sm:$0xff] %v1081
                  %v1083 = vld [vmem:[%s1043 + $0x28] sm:$0xff]
                  %1084 = vst [vmem:[%s1044 + $0x40] sm:$0xff] %v1083
                  %v1085 = vld [vmem:[%s1043 + $0x30] sm:$0xff]
                  %1086 = vst [vmem:[%s1044 + $0x48] sm:$0xff] %v1085
                  %v1087 = vld [vmem:[%s1043 + $0x38] sm:$0xff]
                  %1088 = vst [vmem:[%s1044 + $0x50] sm:$0xff] %v1087
                  %v1089 = vld [vmem:[%s1043 + $0x40] sm:$0xff]
                  %1090 = vst [vmem:[%s1044 + $0x58] sm:$0xff] %v1089
                  %v1091 = vld [vmem:[%s1043 + $0x48] sm:$0xff]
                  %1092 = vst [vmem:[%s1044 + $0x60] sm:$0xff] %v1091
                  %v1093 = vld [vmem:[%s1043 + $0x50] sm:$0xff]
                  %1094 = vst [vmem:[%s1044 + $0x68] sm:$0xff] %v1093
                  %v1095 = vld [vmem:[%s1043 + $0x58] sm:$0xff]
                  %1096 = vst [vmem:[%s1044 + $0x70] sm:$0xff] %v1095
                  %v1097 = vld [vmem:[%s1043 + $0x60] sm:$0xff]
                  %1098 = vst [vmem:[%s1044 + $0x78] sm:$0xff] %v1097
                  %v1099 = vld [vmem:[%s1043 + $0x68] sm:$0xff]
                  %1100 = vst [vmem:[%s1044 + $0x80] sm:$0xff] %v1099
                  %v1101 = vld [vmem:[%s1043 + $0x70] sm:$0xff]
                  %1102 = vst [vmem:[%s1044 + $0x88] sm:$0xff] %v1101
                  %v1103 = vld [vmem:[%s1043 + $0x78] sm:$0xff]
                  %1104 = vst [vmem:[%s1044 + $0x90] sm:$0xff] %v1103
                  %v1105 = vld [vmem:[%s1043 + $0x80] sm:$0xff]
                  %1106 = vst [vmem:[%s1044 + $0x98] sm:$0xff] %v1105
                  %v1107 = vld [vmem:[%s1043 + $0x88] sm:$0xff]
                  %1108 = vst [vmem:[%s1044 + $0xa0] sm:$0xff] %v1107
                  %v1109 = vld [vmem:[%s1043 + $0x20] sm:$0xff]
                  %1110 = vst [vmem:[%s1044 + $0x50] sm:$0xff] %v1109
                  %v1111 = vld [vmem:[%s1043 + $0x28] sm:$0xff]
                  %1112 = vst [vmem:[%s1044 + $0x58] sm:$0xff] %v1111
                  %v1113 = vld [vmem:[%s1043 + $0x30] sm:$0xff]
                  %1114 = vst [vmem:[%s1044 + $0x60] sm:$0xff] %v1113
                  %v1115 = vld [vmem:[%s1043 + $0x38] sm:$0xff]
                  %1116 = vst [vmem:[%s1044 + $0x68] sm:$0xff] %v1115
                  %v1117 = vld [vmem:[%s1043 + $0x40] sm:$0xff]
                  %1118 = vst [vmem:[%s1044 + $0x70] sm:$0xff] %v1117
                  %v1119 = vld [vmem:[%s1043 + $0x48] sm:$0xff]
                  %1120 = vst [vmem:[%s1044 + $0x78] sm:$0xff] %v1119
                  %v1121 = vld [vmem:[%s1043 + $0x50] sm:$0xff]
                  %1122 = vst [vmem:[%s1044 + $0x80] sm:$0xff] %v1121
                  %v1123 = vld [vmem:[%s1043 + $0x58] sm:$0xff]
                  %1124 = vst [vmem:[%s1044 + $0x88] sm:$0xff] %v1123
                  %v1125 = vld [vmem:[%s1043 + $0x60] sm:$0xff]
                  %1126 = vst [vmem:[%s1044 + $0x90] sm:$0xff] %v1125
                  %v1127 = vld [vmem:[%s1043 + $0x68] sm:$0xff]
                  %1128 = vst [vmem:[%s1044 + $0x98] sm:$0xff] %v1127
                  %v1129 = vld [vmem:[%s1043 + $0x70] sm:$0xff]
                  %1130 = vst [vmem:[%s1044 + $0xa0] sm:$0xff] %v1129
                  %v1131 = vld [vmem:[%s1043 + $0x78] sm:$0xff]
                  %1132 = vst [vmem:[%s1044 + $0xa8] sm:$0xff] %v1131
                  %v1133 = vld [vmem:[%s1043 + $0x80] sm:$0xff]
                  %1134 = vst [vmem:[%s1044 + $0xb0] sm:$0xff] %v1133
                  %v1135 = vld [vmem:[%s1043 + $0x88] sm:$0xff]
                  %1136 = vst [vmem:[%s1044 + $0xb8] sm:$0xff] %v1135
                  %v1137 = vld [vmem:[%s1043 + $0x90] sm:$0xff]
                  %1138 = vst [vmem:[%s1044 + $0xc0] sm:$0xff] %v1137
                  %v1139 = vld [vmem:[%s1043 + $0x98] sm:$0xff]
                  %1140 = vst [vmem:[%s1044 + $0xc8] sm:$0xff] %v1139
                  %v1141 = vld [vmem:[%s1043 + $0x30] sm:$0xff]
                  %1142 = vst [vmem:[%s1044 + $0x78] sm:$0xff] %v1141
                  %v1143 = vld [vmem:[%s1043 + $0x38] sm:$0xff]
                  %1144 = vst [vmem:[%s1044 + $0x80] sm:$0xff] %v1143
                  %v1145 = vld [vmem:[%s1043 + $0x40] sm:$0xff]
                  %1146 = vst [vmem:[%s1044 + $0x88] sm:$0xff] %v1145
                  %v1147 = vld [vmem:[%s1043 + $0x48] sm:$0xff]
                  %1148 = vst [vmem:[%s1044 + $0x90] sm:$0xff] %v1147
                  %v1149 = vld [vmem:[%s1043 + $0x50] sm:$0xff]
                  %1150 = vst [vmem:[%s1044 + $0x98] sm:$0xff] %v1149
                  %v1151 = vld [vmem:[%s1043 + $0x58] sm:$0xff]
                  %1152 = vst [vmem:[%s1044 + $0xa0] sm:$0xff] %v1151
                  %v1153 = vld [vmem:[%s1043 + $0x60] sm:$0xff]
                  %1154 = vst [vmem:[%s1044 + $0xa8] sm:$0xff] %v1153
                  %v1155 = vld [vmem:[%s1043 + $0x68] sm:$0xff]
                  %1156 = vst [vmem:[%s1044 + $0xb0] sm:$0xff] %v1155
                  %v1157 = vld [vmem:[%s1043 + $0x70] sm:$0xff]
                  %1158 = vst [vmem:[%s1044 + $0xb8] sm:$0xff] %v1157
                  %v1159 = vld [vmem:[%s1043 + $0x78] sm:$0xff]
                  %1160 = vst [vmem:[%s1044 + $0xc0] sm:$0xff] %v1159
                  %v1161 = vld [vmem:[%s1043 + $0x80] sm:$0xff]
                  %1162 = vst [vmem:[%s1044 + $0xc8] sm:$0xff] %v1161
                  %v1163 = vld [vmem:[%s1043 + $0x88] sm:$0xff]
                  %1164 = vst [vmem:[%s1044 + $0xd0] sm:$0xff] %v1163
                  %v1165 = vld [vmem:[%s1043 + $0x90] sm:$0xff]
                  %1166 = vst [vmem:[%s1044 + $0xd8] sm:$0xff] %v1165
                  %v1167 = vld [vmem:[%s1043 + $0x98] sm:$0xff]
                  %1168 = vst [vmem:[%s1044 + $0xe0] sm:$0xff] %v1167
                  %v1169 = vld [vmem:[%s1043 + $0xa0] sm:$0xff]
                  %1170 = vst [vmem:[%s1044 + $0xe8] sm:$0xff] %v1169
                  %v1171 = vld [vmem:[%s1043 + $0xa8] sm:$0xff]
                  %1172 = vst [vmem:[%s1044 + $0xf0] sm:$0xff] %v1171
                  %s1173 = sadd.s32 1, %s1042
                  %p1174 = scmp.ge.s32.totalorder %s1173, %s1033
                  %s1175 = scalar_select %p1174, 0, %s1173
                  %s1176 = smul.u32 %s1175, 128
                  %s1177 = smul.u32 %s1175, 128
                  %s1178 = scalar_lea.vmem %s796, %s1176 [#allocation4]
                  %s1179 = scalar_lea.vmem %s807, %s1177
                $region152: #{upproj_forward.3} parent=146 // loop_footer
                  %s1039 = sadd.s32 %s1037, 1
                $region153: #{upproj_forward.3} parent=146 // loop_footer_branch
                  %1036 = sbr.rel target = $region149
                $region154: #{upproj_forward.3} parent=146 // loop_exit
                  _
                %s1180 = sshrl.u32 %s1032, 4
                %s1181 = sand.u32 %s1032, 15
                %s1182 = smul.u32 %s1180, 16
                %s1183 = smul.u32 128, %s1182
                %s1184 = sshra.s32 %s1183, 4
                %s1185 = scalar_lea.vmem %s796, %s1184 [#allocation4]
                %s1186 = smul.u32 128, %s1182
                %s1187 = sshra.s32 %s1186, 4
                %s1188 = scalar_lea.vmem %s807, %s1187
                // While loop
                $region155: #{upproj_forward.3} parent=146 // loop_pre_header
                  _
                $region156: #{upproj_forward.3} parent=146 // loop_header
                  %s1192 = sphi 0, %s1194
                  %p1193 = scmp.ge.s32.totalorder %s1192, %s1181
                  %s1197 = sphi 0, %s1210
                  %s1198 = sphi %s1185, %s1213
                  %s1199 = sphi %s1188, %s1214
                $region157: #{upproj_forward.3} parent=146 // loop_header_branch
                  %1196 = sbr.rel (%p1193) target = $region161
                $region158: #{upproj_forward.3} parent=146 // loop_body
                  %v1200 = vld [vmem:[%s1198] sm:$0xff]
                  %1201 = vst [vmem:[%s1199] sm:$0xff] %v1200
                  %v1202 = vld [vmem:[%s1198 + $0x10] sm:$0xff]
                  %1203 = vst [vmem:[%s1199 + $0x28] sm:$0xff] %v1202
                  %v1204 = vld [vmem:[%s1198 + $0x20] sm:$0xff]
                  %1205 = vst [vmem:[%s1199 + $0x50] sm:$0xff] %v1204
                  %v1206 = vld [vmem:[%s1198 + $0x30] sm:$0xff]
                  %1207 = vst [vmem:[%s1199 + $0x78] sm:$0xff] %v1206
                  %s1208 = sadd.s32 1, %s1197
                  %p1209 = scmp.ge.s32.totalorder %s1208, %s1181
                  %s1210 = scalar_select %p1209, 0, %s1208
                  %s1211 = smul.u32 %s1210, 8
                  %s1212 = smul.u32 %s1210, 8
                  %s1213 = scalar_lea.vmem %s1185, %s1211 [#allocation4]
                  %s1214 = scalar_lea.vmem %s1188, %s1212
                $region159: #{upproj_forward.3} parent=146 // loop_footer
                  %s1194 = sadd.s32 %s1192, 1
                $region160: #{upproj_forward.3} parent=146 // loop_footer_branch
                  %1191 = sbr.rel target = $region156
                $region161: #{upproj_forward.3} parent=146 // loop_exit
                  _
                %s1215 = sshllo.u32 0, %s1027
                loop: start=0, step=1, limit=1
                $region162: #{upproj_forward.3} parent=146 // loop_pre_header
                  _
                $region163: #{upproj_forward.3} parent=146 // loop_header
                  %s1217 = sphi 0, %s1221
                  %p1218 = scmp.ge.s32.totalorder %s1217, 1
                  %s1222 = sphi %s1029, %s1029
                  %s1223 = sphi %s1031, %s1031
                $region164: #{upproj_forward.3} parent=146 // loop_header_branch
                  %1220 = sbr.rel (%p1218) target = $region168
                $region165: #{upproj_forward.3} parent=146 // loop_body
                  %v1224 = vld [vmem:[%s1222] sm:%s1215]
                  %1225 = vst [vmem:[%s1223] sm:%s1215] %v1224
                  %v1226 = vld [vmem:[%s1222 + $0x10] sm:%s1215]
                  %1227 = vst [vmem:[%s1223 + $0x28] sm:%s1215] %v1226
                  %v1228 = vld [vmem:[%s1222 + $0x20] sm:%s1215]
                  %1229 = vst [vmem:[%s1223 + $0x50] sm:%s1215] %v1228
                  %v1230 = vld [vmem:[%s1222 + $0x30] sm:%s1215]
                  %1231 = vst [vmem:[%s1223 + $0x78] sm:%s1215] %v1230
                $region166: #{upproj_forward.3} parent=146 // loop_footer
                  %s1221 = sadd.s32 1, %s1217
                $region167: #{upproj_forward.3} parent=146 // loop_footer_branch
                  %1216 = sbr.rel target = $region163
                $region168: #{upproj_forward.3} parent=146 // loop_exit
                  _
              $region147: #{upproj_forward.3} parent=113 // pred_fallthru
                _
            $region114: #{upproj_forward.3} parent=109 // pred_fallthru
              _
            // Predicated region
            $region115: #{upproj_forward.3} parent=109 // pred_check
              %p816 = pneg %p812
            $region116: #{upproj_forward.3} parent=109 // pred_check_branch
              %818 = sbr.rel (%p816) target = $region118
            $region117: #{upproj_forward.3} parent=109 // pred_region
              %s819 = sshllo.u32 0, %s808
              loop: start=0, step=1, limit=1
              $region119: #{upproj_forward.3} parent=117 // loop_pre_header
                _
              $region120: #{upproj_forward.3} parent=117 // loop_header
                %s821 = sphi 0, %s825
                %p822 = scmp.ge.s32.totalorder %s821, 1
                %s826 = sphi %s796, %s796
                %s827 = sphi %s807, %s807
              $region121: #{upproj_forward.3} parent=117 // loop_header_branch
                %824 = sbr.rel (%p822) target = $region125
              $region122: #{upproj_forward.3} parent=117 // loop_body
                %v828 = vld [vmem:[%s826] sm:%s819]
                %829 = vst [vmem:[%s827] sm:%s819] %v828
                %v830 = vld [vmem:[%s826 + $0x10] sm:%s819]
                %831 = vst [vmem:[%s827 + $0x28] sm:%s819] %v830
                %v832 = vld [vmem:[%s826 + $0x20] sm:%s819]
                %833 = vst [vmem:[%s827 + $0x50] sm:%s819] %v832
                %v834 = vld [vmem:[%s826 + $0x30] sm:%s819]
                %835 = vst [vmem:[%s827 + $0x78] sm:%s819] %v834
              $region123: #{upproj_forward.3} parent=117 // loop_footer
                %s825 = sadd.s32 1, %s821
              $region124: #{upproj_forward.3} parent=117 // loop_footer_branch
                %820 = sbr.rel target = $region120
              $region125: #{upproj_forward.3} parent=117 // loop_exit
                _
            $region118: #{upproj_forward.3} parent=109 // pred_fallthru
              _
          $region110: #{upproj_forward.3} parent=105 // pred_fallthru
            _
          %1232 = vnop
        $region106: #{upproj_forward.3} parent=97 // pred_fallthru
          _
      $region98: #{upproj_forward.3} parent=5 // pred_fallthru
        _
      %p1233 = scmp.le.s32.totalorder 2, %s11
      // Predicated region
      $region169: #{upproj_forward.3} parent=5 // pred_check
        %p1234 = pneg %p1233
      $region170: #{upproj_forward.3} parent=5 // pred_check_branch
        %1236 = sbr.rel (%p1234) target = $region172
      $region171: #{upproj_forward.3} parent=5 // pred_region
        %s1237 = ssub.s32 %s11, 2
        // Predicated region
        $region173: #{upproj_forward.3} parent=171 // pred_check
          %p1238 = pneg %p129
        $region174: #{upproj_forward.3} parent=171 // pred_check_branch
          %1240 = sbr.rel (%p1238) target = $region176
        $region175: #{upproj_forward.3} parent=171 // pred_region
          %s1241 = sand.u32 %s114, 1
          %s1242 = sand.u32 %s114, 1
          %s1243 = smul.addr %s1242, 64
          %s1244 = scalar_lea.vmem [#allocation4], %s1243
        $region176: #{upproj_forward.3} parent=171 // pred_fallthru
          _
      $region172: #{upproj_forward.3} parent=5 // pred_fallthru
        _
    $region6: #{upproj_forward.3} parent=1 // loop_footer
      %s15 = sadd.s32 1, %s11
    $region7: #{upproj_forward.3} parent=1 // loop_footer_branch
      %10 = sbr.rel target = $region3
    $region8: #{upproj_forward.3} parent=1 // loop_exit
      _

// kernel: upproj_forward.4
$region0: #{upproj_forward.4}
  #allocation0 [shape = 'u32[]', space=smem, size = 0x4, offset = 0x4, fixed_abs, tag = 'smem constant byte address 0x4 - core index']
  #allocation1 [shape = 'u32[144,128]{1,0:T(1,128)}', space=vmem, size = 0x12000, scoped, tag = 'internal scratch']
  #allocation2 [shape = 'f32[1,1]{1,0:T(1,128)S(6)}', space=smem, size = 0x200, scoped, tag = 'scoped memory for upproj_forward.4']
  %s0 = inlined_call_operand.vmem [shape: bf16[8,128], index: 0, kind: input, shape index: {}]
  %s1 = inlined_call_operand.vmem [shape: bf16[128,512], index: 1, kind: input, shape index: {}]
  %s2 = inlined_call_operand.vmem [shape: f32[8,1], index: 2, kind: input, shape index: {}]
  %s3 = inlined_call_operand.<no memory space> [shape: f32[1,1], index: 3, kind: input, shape index: {}]
  %s4 = inlined_call_operand.vmem [shape: f32[8,512], index: 4, kind: output, shape index: {}]
  %s5 = sld [smem:[#allocation0]]
  $region87: #{upproj_forward.4} parent=0
    _
  %s7 = ssub.s32 1, %s5
  %s8 = scalar_select 0, %s7, %s5
  %9 = sst [smem:[#allocation2]] %s3
  $region1: #{upproj_forward.4} parent=0
    #allocation3 [shape = 'u8[131072]{0}', space=vmem, size = 0x20000, scoped, tag = 'input window, operand 1']
    loop: start=0, step=1, limit=4
    $region2: #{upproj_forward.4} parent=1 // loop_pre_header
      _
    $region3: #{upproj_forward.4} parent=1 // loop_header
      %s11 = sphi 0, %s15
      %p12 = scmp.ge.s32.totalorder %s11, 4
      %s19 = sphi 0, %s19
      %s21 = sphi 0, %s19
      %s22 = sphi 0, %s21
      %s36 = sphi 0, %s22
      %s42 = sphi 0, %s44
      %s45 = sphi 0, %s42
      %s46 = sphi 0, %s45
      %s62 = sphi 0, %s46
      %s66 = sphi 0, %s66
      %s68 = sphi 0, %s66
      %s69 = sphi 0, %s68
      %s83 = sphi 0, %s69
      %s87 = sphi 0, %s87
      %s89 = sphi 0, %s87
      %s90 = sphi 0, %s89
      %s104 = sphi 0, %s90
      %s110 = sphi 0, %s112
      %s113 = sphi 0, %s110
      %s114 = sphi 0, %s113
      %s130 = sphi 0, %s114
    $region4: #{upproj_forward.4} parent=1 // loop_header_branch
      %14 = sbr.rel (%p12) target = $region8
    $region5: #{upproj_forward.4} parent=1 // loop_body
      %s16 = ssub.s32 %s11, 1
      %s17 = ssub.s32 %s11, 2
      %s18 = sadd.s32 %s11, 1
      %s20 = sadd.s32 %s19, 1
      %p23 = scmp.eq.s32.totalorder %s11, 1
      %p24 = scmp.ne.s32.totalorder %s19, %s21
      %p25 = scmp.eq.s32.totalorder %s11, 0
      %p26 = por %p24, %p25
      %p27 = scmp.ne.s32.totalorder %s19, %s21
      %p28 = scmp.eq.s32.totalorder %s16, 1
      %p29 = por %p27, %p28
      %p30 = scmp.ne.s32.totalorder %s21, %s22
      %p31 = scmp.eq.s32.totalorder %s16, 0
      %p32 = por %p30, %p31
      %p33 = scmp.ne.s32.totalorder %s21, %s22
      %p34 = scmp.eq.s32.totalorder %s17, 1
      %p35 = por %p33, %p34
      %p37 = scmp.ne.s32.totalorder %s22, %s36
      %p38 = scmp.eq.s32.totalorder %s17, 0
      %p39 = por %p37, %p38
      %s40 = ssub.s32 %s11, %s18
      %p41 = scmp.eq.s32.totalorder %s40, 0
      %s43 = sadd.s32 %s42, 1
      %s44 = scalar_select %p41, %s42, %s43
      %p47 = pneg %p41
      %p48 = scmp.eq.s32.totalorder %s11, 1
      %p49 = por %p47, %p48
      %p50 = scmp.ne.s32.totalorder %s42, %s45
      %p51 = scmp.eq.s32.totalorder %s11, 0
      %p52 = por %p50, %p51
      %p53 = scmp.ne.s32.totalorder %s42, %s45
      %p54 = scmp.eq.s32.totalorder %s16, 1
      %p55 = por %p53, %p54
      %p56 = scmp.ne.s32.totalorder %s45, %s46
      %p57 = scmp.eq.s32.totalorder %s16, 0
      %p58 = por %p56, %p57
      %p59 = scmp.ne.s32.totalorder %s45, %s46
      %p60 = scmp.eq.s32.totalorder %s17, 1
      %p61 = por %p59, %p60
      %p63 = scmp.ne.s32.totalorder %s46, %s62
      %p64 = scmp.eq.s32.totalorder %s17, 0
      %p65 = por %p63, %p64
      %s67 = sadd.s32 %s66, 1
      %p70 = scmp.eq.s32.totalorder %s11, 1
      %p71 = scmp.ne.s32.totalorder %s66, %s68
      %p72 = scmp.eq.s32.totalorder %s11, 0
      %p73 = por %p71, %p72
      %p74 = scmp.ne.s32.totalorder %s66, %s68
      %p75 = scmp.eq.s32.totalorder %s16, 1
      %p76 = por %p74, %p75
      %p77 = scmp.ne.s32.totalorder %s68, %s69
      %p78 = scmp.eq.s32.totalorder %s16, 0
      %p79 = por %p77, %p78
      %p80 = scmp.ne.s32.totalorder %s68, %s69
      %p81 = scmp.eq.s32.totalorder %s17, 1
      %p82 = por %p80, %p81
      %p84 = scmp.ne.s32.totalorder %s69, %s83
      %p85 = scmp.eq.s32.totalorder %s17, 0
      %p86 = por %p84, %p85
      %s88 = sadd.s32 %s87, 1
      %p91 = scmp.eq.s32.totalorder %s11, 1
      %p92 = scmp.ne.s32.totalorder %s87, %s89
      %p93 = scmp.eq.s32.totalorder %s11, 0
      %p94 = por %p92, %p93
      %p95 = scmp.ne.s32.totalorder %s87, %s89
      %p96 = scmp.eq.s32.totalorder %s16, 1
      %p97 = por %p95, %p96
      %p98 = scmp.ne.s32.totalorder %s89, %s90
      %p99 = scmp.eq.s32.totalorder %s16, 0
      %p100 = por %p98, %p99
      %p101 = scmp.ne.s32.totalorder %s89, %s90
      %p102 = scmp.eq.s32.totalorder %s17, 1
      %p103 = por %p101, %p102
      %p105 = scmp.ne.s32.totalorder %s90, %s104
      %p106 = scmp.eq.s32.totalorder %s17, 0
      %p107 = por %p105, %p106
      %s108 = ssub.s32 %s11, %s18
      %p109 = scmp.eq.s32.totalorder %s108, 0
      %s111 = sadd.s32 %s110, 1
      %s112 = scalar_select %p109, %s110, %s111
      %p115 = pneg %p109
      %p116 = scmp.eq.s32.totalorder %s11, 1
      %p117 = por %p115, %p116
      %p118 = scmp.ne.s32.totalorder %s110, %s113
      %p119 = scmp.eq.s32.totalorder %s11, 0
      %p120 = por %p118, %p119
      %p121 = scmp.ne.s32.totalorder %s110, %s113
      %p122 = scmp.eq.s32.totalorder %s16, 1
      %p123 = por %p121, %p122
      %p124 = scmp.ne.s32.totalorder %s113, %s114
      %p125 = scmp.eq.s32.totalorder %s16, 0
      %p126 = por %p124, %p125
      %p127 = scmp.ne.s32.totalorder %s113, %s114
      %p128 = scmp.eq.s32.totalorder %s17, 1
      %p129 = por %p127, %p128
      %p131 = scmp.ne.s32.totalorder %s114, %s130
      %p132 = scmp.eq.s32.totalorder %s17, 0
      %p133 = por %p131, %p132
      %p134 = scmp.le.s32.totalorder 1, %s11
      %p135 = scmp.lt.s32.totalorder %s11, 3
      %p136 = pnand %p134, %p135
      %p137 = pneg %p136
      // Predicated region
      $region9: #{upproj_forward.4} parent=5 // pred_check
        _
      $region10: #{upproj_forward.4} parent=5 // pred_check_branch
        %139 = sbr.rel (%p136) target = $region12
      $region11: #{upproj_forward.4} parent=5 // pred_region
        %s140 = ssub.s32 %s11, 1
        // Predicated region
        $region13: #{upproj_forward.4} parent=11 // pred_check
          %p141 = pneg %p32
        $region14: #{upproj_forward.4} parent=11 // pred_check_branch
          %143 = sbr.rel (%p141) target = $region16
        $region15: #{upproj_forward.4} parent=11 // pred_region
          _
        $region16: #{upproj_forward.4} parent=11 // pred_fallthru
          _
        // Predicated region
        $region17: #{upproj_forward.4} parent=11 // pred_check
          %p144 = pneg %p79
        $region18: #{upproj_forward.4} parent=11 // pred_check_branch
          %146 = sbr.rel (%p144) target = $region20
        $region19: #{upproj_forward.4} parent=11 // pred_region
          _
        $region20: #{upproj_forward.4} parent=11 // pred_fallthru
          _
        // Predicated region
        $region21: #{upproj_forward.4} parent=11 // pred_check
          %p147 = pneg %p100
        $region22: #{upproj_forward.4} parent=11 // pred_check_branch
          %149 = sbr.rel (%p147) target = $region24
        $region23: #{upproj_forward.4} parent=11 // pred_region
          _
        $region24: #{upproj_forward.4} parent=11 // pred_fallthru
          _
      $region12: #{upproj_forward.4} parent=5 // pred_fallthru
        _
      %p150 = scmp.lt.s32.totalorder %s11, 2
      // Predicated region
      $region25: #{upproj_forward.4} parent=5 // pred_check
        %p151 = pneg %p150
      $region26: #{upproj_forward.4} parent=5 // pred_check_branch
        %153 = sbr.rel (%p151) target = $region28
      $region27: #{upproj_forward.4} parent=5 // pred_region
        // Predicated region
        $region29: #{upproj_forward.4} parent=27 // pred_check
          %p154 = pneg %p52
        $region30: #{upproj_forward.4} parent=27 // pred_check_branch
          %156 = sbr.rel (%p154) target = $region32
        $region31: #{upproj_forward.4} parent=27 // pred_region
          %s157 = sand.u32 %s42, 1
          %s158 = sand.u32 %s42, 1
          %s159 = smul.addr %s158, 128
          %s160 = scalar_lea.vmem [#allocation3], %s159
          %s161 = smul.u32 2, %s11
          %s162 = smul.addr %s161, 4
          %s163 = scalar_lea.vmem %s1, %s162
          // Predicated region
          $region33: #{upproj_forward.4} parent=31 // pred_check
            _
          $region34: #{upproj_forward.4} parent=31 // pred_check_branch
            %165 = sbr.rel (0) target = $region36
          $region35: #{upproj_forward.4} parent=31 // pred_region
            // Predicated region
            $region37: #{upproj_forward.4} parent=35 // pred_check
              _
            $region38: #{upproj_forward.4} parent=35 // pred_check_branch
              %167 = sbr.rel (0) target = $region40
            $region39: #{upproj_forward.4} parent=35 // pred_region
              // Predicated region
              $region52: #{upproj_forward.4} parent=39 // pred_check
                _
              $region53: #{upproj_forward.4} parent=39 // pred_check_branch
                %212 = sbr.rel (0) target = $region55
              $region54: #{upproj_forward.4} parent=39 // pred_region
                loop: start=0, step=1, limit=1
                $region56: #{upproj_forward.4} parent=54 // loop_pre_header
                  _
                $region57: #{upproj_forward.4} parent=54 // loop_header
                  %s214 = sphi 0, %s218
                  %p215 = scmp.ge.s32.totalorder %s214, 1
                  %s219 = sphi %s163, %s163
                  %s220 = sphi %s160, %s160
                $region58: #{upproj_forward.4} parent=54 // loop_header_branch
                  %217 = sbr.rel (%p215) target = $region62
                $region59: #{upproj_forward.4} parent=54 // loop_body
                  %v221 = vld [vmem:[%s219] sm:$0xff]
                  %222 = vst [vmem:[%s220] sm:$0xff] %v221
                  %v223 = vld [vmem:[%s219 + $0x10] sm:$0xff]
                  %224 = vst [vmem:[%s220 + $0x8] sm:$0xff] %v223
                  %v225 = vld [vmem:[%s219 + $0x20] sm:$0xff]
                  %226 = vst [vmem:[%s220 + $0x10] sm:$0xff] %v225
                  %v227 = vld [vmem:[%s219 + $0x30] sm:$0xff]
                  %228 = vst [vmem:[%s220 + $0x18] sm:$0xff] %v227
                  %v229 = vld [vmem:[%s219 + $0x40] sm:$0xff]
                  %230 = vst [vmem:[%s220 + $0x20] sm:$0xff] %v229
                  %v231 = vld [vmem:[%s219 + $0x50] sm:$0xff]
                  %232 = vst [vmem:[%s220 + $0x28] sm:$0xff] %v231
                  %v233 = vld [vmem:[%s219 + $0x60] sm:$0xff]
                  %234 = vst [vmem:[%s220 + $0x30] sm:$0xff] %v233
                  %v235 = vld [vmem:[%s219 + $0x70] sm:$0xff]
                  %236 = vst [vmem:[%s220 + $0x38] sm:$0xff] %v235
                  %v237 = vld [vmem:[%s219 + $0x80] sm:$0xff]
                  %238 = vst [vmem:[%s220 + $0x40] sm:$0xff] %v237
                  %v239 = vld [vmem:[%s219 + $0x90] sm:$0xff]
                  %240 = vst [vmem:[%s220 + $0x48] sm:$0xff] %v239
                  %v241 = vld [vmem:[%s219 + $0xa0] sm:$0xff]
                  %242 = vst [vmem:[%s220 + $0x50] sm:$0xff] %v241
                  %v243 = vld [vmem:[%s219 + $0xb0] sm:$0xff]
                  %244 = vst [vmem:[%s220 + $0x58] sm:$0xff] %v243
                  %v245 = vld [vmem:[%s219 + $0xc0] sm:$0xff]
                  %246 = vst [vmem:[%s220 + $0x60] sm:$0xff] %v245
                  %v247 = vld [vmem:[%s219 + $0xd0] sm:$0xff]
                  %248 = vst [vmem:[%s220 + $0x68] sm:$0xff] %v247
                  %v249 = vld [vmem:[%s219 + $0xe0] sm:$0xff]
                  %250 = vst [vmem:[%s220 + $0x70] sm:$0xff] %v249
                  %v251 = vld [vmem:[%s219 + $0xf0] sm:$0xff]
                  %252 = vst [vmem:[%s220 + $0x78] sm:$0xff] %v251
                $region60: #{upproj_forward.4} parent=54 // loop_footer
                  %s218 = sadd.s32 1, %s214
                $region61: #{upproj_forward.4} parent=54 // loop_footer_branch
                  %213 = sbr.rel target = $region57
                $region62: #{upproj_forward.4} parent=54 // loop_exit
                  _
              $region55: #{upproj_forward.4} parent=39 // pred_fallthru
                _
              // Predicated region
              $region63: #{upproj_forward.4} parent=39 // pred_check
                _
              $region64: #{upproj_forward.4} parent=39 // pred_check_branch
                %254 = sbr.rel target = $region66
              $region65: #{upproj_forward.4} parent=39 // pred_region
                _
              $region66: #{upproj_forward.4} parent=39 // pred_fallthru
                _
            $region40: #{upproj_forward.4} parent=35 // pred_fallthru
              _
            // Predicated region
            $region41: #{upproj_forward.4} parent=35 // pred_check
              _
            $region42: #{upproj_forward.4} parent=35 // pred_check_branch
              %169 = sbr.rel target = $region44
            $region43: #{upproj_forward.4} parent=35 // pred_region
              loop: start=0, step=1, limit=1
              $region45: #{upproj_forward.4} parent=43 // loop_pre_header
                _
              $region46: #{upproj_forward.4} parent=43 // loop_header
                %s172 = sphi 0, %s176
                %p173 = scmp.ge.s32.totalorder %s172, 1
                %s177 = sphi %s163, %s163
                %s178 = sphi %s160, %s160
              $region47: #{upproj_forward.4} parent=43 // loop_header_branch
                %175 = sbr.rel (%p173) target = $region51
              $region48: #{upproj_forward.4} parent=43 // loop_body
                %v179 = vld [vmem:[%s177] sm:$0xff]
                %180 = vst [vmem:[%s178] sm:$0xff] %v179
                %v181 = vld [vmem:[%s177 + $0x10] sm:$0xff]
                %182 = vst [vmem:[%s178 + $0x8] sm:$0xff] %v181
                %v183 = vld [vmem:[%s177 + $0x20] sm:$0xff]
                %184 = vst [vmem:[%s178 + $0x10] sm:$0xff] %v183
                %v185 = vld [vmem:[%s177 + $0x30] sm:$0xff]
                %186 = vst [vmem:[%s178 + $0x18] sm:$0xff] %v185
                %v187 = vld [vmem:[%s177 + $0x40] sm:$0xff]
                %188 = vst [vmem:[%s178 + $0x20] sm:$0xff] %v187
                %v189 = vld [vmem:[%s177 + $0x50] sm:$0xff]
                %190 = vst [vmem:[%s178 + $0x28] sm:$0xff] %v189
                %v191 = vld [vmem:[%s177 + $0x60] sm:$0xff]
                %192 = vst [vmem:[%s178 + $0x30] sm:$0xff] %v191
                %v193 = vld [vmem:[%s177 + $0x70] sm:$0xff]
                %194 = vst [vmem:[%s178 + $0x38] sm:$0xff] %v193
                %v195 = vld [vmem:[%s177 + $0x80] sm:$0xff]
                %196 = vst [vmem:[%s178 + $0x40] sm:$0xff] %v195
                %v197 = vld [vmem:[%s177 + $0x90] sm:$0xff]
                %198 = vst [vmem:[%s178 + $0x48] sm:$0xff] %v197
                %v199 = vld [vmem:[%s177 + $0xa0] sm:$0xff]
                %200 = vst [vmem:[%s178 + $0x50] sm:$0xff] %v199
                %v201 = vld [vmem:[%s177 + $0xb0] sm:$0xff]
                %202 = vst [vmem:[%s178 + $0x58] sm:$0xff] %v201
                %v203 = vld [vmem:[%s177 + $0xc0] sm:$0xff]
                %204 = vst [vmem:[%s178 + $0x60] sm:$0xff] %v203
                %v205 = vld [vmem:[%s177 + $0xd0] sm:$0xff]
                %206 = vst [vmem:[%s178 + $0x68] sm:$0xff] %v205
                %v207 = vld [vmem:[%s177 + $0xe0] sm:$0xff]
                %208 = vst [vmem:[%s178 + $0x70] sm:$0xff] %v207
                %v209 = vld [vmem:[%s177 + $0xf0] sm:$0xff]
                %210 = vst [vmem:[%s178 + $0x78] sm:$0xff] %v209
              $region49: #{upproj_forward.4} parent=43 // loop_footer
                %s176 = sadd.s32 1, %s172
              $region50: #{upproj_forward.4} parent=43 // loop_footer_branch
                %171 = sbr.rel target = $region46
              $region51: #{upproj_forward.4} parent=43 // loop_exit
                _
            $region44: #{upproj_forward.4} parent=35 // pred_fallthru
              _
          $region36: #{upproj_forward.4} parent=31 // pred_fallthru
            _
          %255 = vnop
        $region32: #{upproj_forward.4} parent=27 // pred_fallthru
          _
      $region28: #{upproj_forward.4} parent=5 // pred_fallthru
        _
      %p256 = scmp.le.s32.totalorder 1, %s11
      %p257 = scmp.lt.s32.totalorder %s11, 3
      %p258 = pnand %p256, %p257
      %p259 = pneg %p258
      // Predicated region
      $region67: #{upproj_forward.4} parent=5 // pred_check
        _
      $region68: #{upproj_forward.4} parent=5 // pred_check_branch
        %261 = sbr.rel (%p258) target = $region70
      $region69: #{upproj_forward.4} parent=5 // pred_region
        %s262 = ssub.s32 %s11, 1
        %s263 = sand.u32 %s45, 1
        %s264 = sand.u32 %s45, 1
        %s265 = smul.addr %s264, 128
        %s266 = scalar_lea.vmem [#allocation3], %s265
        // Predicated region
        $region71: #{upproj_forward.4} parent=69 // pred_check
          %p267 = pneg %p58
        $region72: #{upproj_forward.4} parent=69 // pred_check_branch
          %269 = sbr.rel (%p267) target = $region74
        $region73: #{upproj_forward.4} parent=69 // pred_region
          _
        $region74: #{upproj_forward.4} parent=69 // pred_fallthru
          _
        %p270 = pneg %p32
        %p271 = pneg %p29
        %s272 = sand.u32 %s45, 1
        %s273 = sand.u32 %s45, 1
        %s274 = smul.addr %s273, 128
        %s275 = scalar_lea.vmem [#allocation3], %s274
        %p276 = pneg %p58
        %p277 = pneg %p55
        %p278 = pneg %p79
        %p279 = pneg %p76
        %p280 = pneg %p100
        %p281 = pneg %p97
        %p282 = pneg %p126
        %p283 = pneg %p123
        %s284 = smul.u32 2, %s16
        %p285 = scmp.lt.s32.totalorder %s284, 3
        %s286 = scalar_select %p285, %s284, 3
        %s287 = smul.addr %s286, 8
        %s288 = scalar_lea.vmem %s4, %s287
        %s289 = smul.u32 2, %s16
        %s290 = smul.u32 2, %s16
        %p291 = scmp.lt.s32.totalorder %s290, 3
        %s292 = scalar_select %p291, %s290, 3
        %s293 = smul.addr %s292, 8
        %s294 = scalar_lea.vmem %s4, %s293
        %s295 = smul.u32 2, %s16
        %v297 = vld [vmem:[%s0] sm:$0xf]
        %v298 = vld [vmem:[%s266] sm:$0xff]
        %v299 = vld [vmem:[%s266 + $0x8] sm:$0xff]
        %v300 = vld [vmem:[%s266 + $0x10] sm:$0xff]
        %v301 = vld [vmem:[%s266 + $0x18] sm:$0xff]
        %v302 = vld [vmem:[%s266 + $0x20] sm:$0xff]
        %v303 = vld [vmem:[%s266 + $0x28] sm:$0xff]
        %v304 = vld [vmem:[%s266 + $0x30] sm:$0xff]
        %v305 = vld [vmem:[%s266 + $0x38] sm:$0xff]
        %v306 = vld [vmem:[%s266 + $0x40] sm:$0xff]
        %v307 = vld [vmem:[%s266 + $0x48] sm:$0xff]
        %v308 = vld [vmem:[%s266 + $0x50] sm:$0xff]
        %v309 = vld [vmem:[%s266 + $0x58] sm:$0xff]
        %v310 = vld [vmem:[%s266 + $0x60] sm:$0xff]
        %v311 = vld [vmem:[%s266 + $0x68] sm:$0xff]
        %v312 = vld [vmem:[%s266 + $0x70] sm:$0xff]
        %v313 = vld [vmem:[%s266 + $0x78] sm:$0xff]
        %v314 = vld [vmem:[%s2] sm:$0xff]
        %316 = vset.pattern.permute.xlu0 0
        %317 = vperm.xlu0 %316, %v314
        %v318 = vpop.permute.xlu0 %317
        %v336 = vunpack.c.l.b16 %v298
        %v337 = vunpack.c.h.b16 %v298
        %v338 = vunpack.c.l.b16 %v299
        %v339 = vunpack.c.h.b16 %v299
        %v340 = vunpack.c.l.b16 %v300
        %v341 = vunpack.c.h.b16 %v300
        %v342 = vunpack.c.l.b16 %v301
        %v343 = vunpack.c.h.b16 %v301
        %v344 = vunpack.c.l.b16 %v302
        %v345 = vunpack.c.h.b16 %v302
        %v346 = vunpack.c.l.b16 %v303
        %v347 = vunpack.c.h.b16 %v303
        %v348 = vunpack.c.l.b16 %v304
        %v349 = vunpack.c.h.b16 %v304
        %v350 = vunpack.c.l.b16 %v305
        %v351 = vunpack.c.h.b16 %v305
        %v352 = vunpack.c.l.b16 %v306
        %v353 = vunpack.c.h.b16 %v306
        %v354 = vunpack.c.l.b16 %v307
        %v355 = vunpack.c.h.b16 %v307
        %v356 = vunpack.c.l.b16 %v308
        %v357 = vunpack.c.h.b16 %v308
        %v358 = vunpack.c.l.b16 %v309
        %v359 = vunpack.c.h.b16 %v309
        %v360 = vunpack.c.l.b16 %v310
        %v361 = vunpack.c.h.b16 %v310
        %v362 = vunpack.c.l.b16 %v311
        %v363 = vunpack.c.h.b16 %v311
        %v364 = vunpack.c.l.b16 %v312
        %v365 = vunpack.c.h.b16 %v312
        %v366 = vunpack.c.l.b16 %v313
        %v367 = vunpack.c.h.b16 %v313
        %v368 = vpack.c.b16 %v338, %v336
        %v369 = vpack.c.b16 %v339, %v337
        %v370 = vpack.c.b16 %v342, %v340
        %v371 = vpack.c.b16 %v343, %v341
        %v372 = vpack.c.b16 %v346, %v344
        %v373 = vpack.c.b16 %v347, %v345
        %v374 = vpack.c.b16 %v350, %v348
        %v375 = vpack.c.b16 %v351, %v349
        %v376 = vpack.c.b16 %v354, %v352
        %v377 = vpack.c.b16 %v355, %v353
        %v378 = vpack.c.b16 %v358, %v356
        %v379 = vpack.c.b16 %v359, %v357
        %v380 = vpack.c.b16 %v362, %v360
        %v381 = vpack.c.b16 %v363, %v361
        %v382 = vpack.c.b16 %v366, %v364
        %v383 = vpack.c.b16 %v367, %v365
        %400 = vmatprep.subr.bf16.mxu0 %v369
        %401 = vmatpush1.bf16.msra.mxu0 %v368
        %402 = vmatprep.subr.bf16.mxu0 %v371
        %403 = vmatpush1.bf16.msra.mxu0 %v370
        %404 = vmatprep.subr.bf16.mxu0 %v373
        %405 = vmatpush1.bf16.msra.mxu0 %v372
        %406 = vmatprep.subr.bf16.mxu0 %v375
        %407 = vmatpush1.bf16.msra.mxu0 %v374
        %408 = vmatprep.subr.bf16.mxu0 %v377
        %409 = vmatpush1.bf16.msra.mxu0 %v376
        %410 = vmatprep.subr.bf16.mxu0 %v379
        %411 = vmatpush1.bf16.msra.mxu0 %v378
        %412 = vmatprep.subr.bf16.mxu0 %v381
        %413 = vmatpush1.bf16.msra.mxu0 %v380
        %414 = vmatprep.subr.bf16.mxu0 %v383
        %415 = vmatpush1.bf16.msra.mxu0 %v382
        %416 = vmatprep.subr.bf16.mxu0 0
        %417 = vmatpush1.bf16.msra.mxu0 0
        %418 = vmatprep.subr.bf16.mxu0 0
        %419 = vmatpush1.bf16.msra.mxu0 0
        %420 = vmatprep.subr.bf16.mxu0 0
        %421 = vmatpush1.bf16.msra.mxu0 0
        %422 = vmatprep.subr.bf16.mxu0 0
        %423 = vmatpush1.bf16.msra.mxu0 0
        %424 = vmatprep.subr.bf16.mxu0 0
        %425 = vmatpush1.bf16.msra.mxu0 0
        %426 = vmatprep.subr.bf16.mxu0 0
        %427 = vmatpush1.bf16.msra.mxu0 0
        %428 = vmatprep.subr.bf16.mxu0 0
        %429 = vmatpush1.bf16.msra.mxu0 0
        %430 = vmatprep.subr.bf16.mxu0 0
        %431 = vmatpush1.bf16.msra.mxu0 0
        %432 = vmatprep.mubr.bf16.mxu0 0
        %433 = vmatmul.mubr.bf16.gmra.mrb[0].mxu0 %v297
        %v434 = vpop.f32.mrb[0].mxu0
        %v435 = vadd.f32 %v318, %v434
        %v436 = vpop.f32.mrb[0].mxu0
        %v437 = vadd.f32 %v318, %v436
        %v438 = vpop.f32.mrb[0].mxu0
        %v439 = vpop.f32.mrb[0].mxu0
        %440 = vdwg.mxu0
        %s441 = sld [smem:[#allocation2]]
        %vm442 = vcmp.ge.f32.partialorder %v435, 0.0
        %vm443 = vcmp.ge.f32.partialorder %v437, 0.0
        %v444 = vstv %s441
        %v445 = vmul.f32 %v444, %v435
        %v446 = vmul.f32 %v444, %v437
        %v447 = vsel %vm442, %v435, %v445
        %v448 = vsel %vm443, %v437, %v446
        %449 = vst [vmem:[%s294] sm:$0xff] %v447
        %450 = vst [vmem:[%s294 + $0x8] sm:$0xff] %v448
        %s451 = smul.u32 2, %s16
        %p452 = scmp.lt.s32.totalorder %s451, 3
        %s453 = scalar_select %p452, %s451, 3
        %s454 = smul.addr %s453, 8
        %s455 = scalar_lea.vmem %s4, %s454
        // Predicated region
        $region75: #{upproj_forward.4} parent=69 // pred_check
          %p456 = pneg %p123
        $region76: #{upproj_forward.4} parent=69 // pred_check_branch
          %458 = sbr.rel (%p456) target = $region78
        $region77: #{upproj_forward.4} parent=69 // pred_region
          %s459 = smul.u32 2, %s16
        $region78: #{upproj_forward.4} parent=69 // pred_fallthru
          _
      $region70: #{upproj_forward.4} parent=5 // pred_fallthru
        _
      %p460 = scmp.le.s32.totalorder 2, %s11
      // Predicated region
      $region79: #{upproj_forward.4} parent=5 // pred_check
        %p461 = pneg %p460
      $region80: #{upproj_forward.4} parent=5 // pred_check_branch
        %463 = sbr.rel (%p461) target = $region82
      $region81: #{upproj_forward.4} parent=5 // pred_region
        %s464 = ssub.s32 %s11, 2
        // Predicated region
        $region83: #{upproj_forward.4} parent=81 // pred_check
          %p465 = pneg %p129
        $region84: #{upproj_forward.4} parent=81 // pred_check_branch
          %467 = sbr.rel (%p465) target = $region86
        $region85: #{upproj_forward.4} parent=81 // pred_region
          %s468 = smul.u32 2, %s17
          %p469 = scmp.lt.s32.totalorder %s468, 3
          %s470 = scalar_select %p469, %s468, 3
          %s471 = smul.addr %s470, 8
          %s472 = scalar_lea.vmem %s4, %s471
        $region86: #{upproj_forward.4} parent=81 // pred_fallthru
          _
      $region82: #{upproj_forward.4} parent=5 // pred_fallthru
        _
    $region6: #{upproj_forward.4} parent=1 // loop_footer
      %s15 = sadd.s32 1, %s11
    $region7: #{upproj_forward.4} parent=1 // loop_footer_branch
      %10 = sbr.rel target = $region3
    $region8: #{upproj_forward.4} parent=1 // loop_exit
      _

</llo_original>
